<compile_context>
chip_gen: v7x
topology: tpu7x:2x2x1
jax: 0.10.0
libtpu: 0.0.40
codegen_flags: <defaults>
</compile_context>

<pallas_src>
import jax
import jax.numpy as jnp
from jax import lax
from jax.experimental import pallas as pl
from jax.experimental.pallas import tpu as pltpu

# ResNet-50 stem hyper-params (fixed by the PyTorch module).
KH = KW = 7
STRIDE = 2
PAD = 3
POOL_K = 3
POOL_S = 2
POOL_P = 1
BN_EPS = 1e-5
COUT = 64
CPAD = 128  # lane-dense channel padding (extra channels are zero, sliced off at the end)


def _round_up(a, b):
    return (a + b - 1) // b * b


def _pool_tile(ph):
    """Largest divisor of ph that is <= 8 (pooled rows per grid step)."""
    for t in range(min(8, ph), 0, -1):
        if ph % t == 0:
            return t
    return 1


# ----------------------------------------------------------------------------
# Kernel 1: fused (im2col-matmul conv) + folded-BN shift + ReLU
#   patches: [tm, K] bf16, w: [K, 128] bf16 (BN scale folded in), shift: [1, 128] f32
# ----------------------------------------------------------------------------
def _conv_bn_relu_kernel(p_ref, w_ref, shift_ref, o_ref):
    acc = jnp.dot(p_ref[...], w_ref[...], preferred_element_type=jnp.float32)
    o_ref[...] = jnp.maximum(acc + shift_ref[...], 0.0).astype(o_ref.dtype)


def _conv_bn_relu_matmul(patches, w_mat, shift, tm):
    Mp, K = patches.shape
    C = w_mat.shape[1]
    return pl.pallas_call(
        _conv_bn_relu_kernel,
        out_shape=jax.ShapeDtypeStruct((Mp, C), jnp.bfloat16),
        grid_spec=pltpu.PrefetchScalarGridSpec(
            num_scalar_prefetch=0,
            grid=(Mp // tm,),
            in_specs=[
                pl.BlockSpec((tm, K), lambda i: (i, 0)),   # K is the full dim (no pad)
                pl.BlockSpec((K, C), lambda i: (0, 0)),
                pl.BlockSpec((1, C), lambda i: (0, 0)),
            ],
            out_specs=pl.BlockSpec((tm, C), lambda i: (i, 0)),
        ),
        compiler_params=pltpu.CompilerParams(dimension_semantics=("parallel",)),
    )(patches, w_mat, shift)


# ----------------------------------------------------------------------------
# Kernel 2: maxpool 3x3 / stride 2 / pad 1, reading the conv output directly.
#   y_flat: [Mp, C] bf16, flat rows ordered (n, conv_row, w_parity, ow//2), i.e.
#   each conv row is stored as [even columns | odd columns] so the horizontal
#   3-window max needs only unit-stride slices.  Rows for each tile are DMA'd
#   manually from HBM (overlapping row windows can't be expressed with Blocked specs).
# ----------------------------------------------------------------------------
def _maxpool(y_flat, n_img, oh, pw, ph, tp):
    R = 2 * tp + 1          # conv rows needed per tile of tp pooled rows
    row = 2 * pw            # flat rows per conv row (even half + odd half)
    C = y_flat.shape[1]

    def kernel(y_hbm, o_ref, ybuf, sem):
        n = pl.program_id(0)
        i = pl.program_id(1)
        base = n * oh * row  # flat row of (image n, conv row 0)

        # Tile needs conv rows [2*i*tp - 1, 2*i*tp + 2*tp]; row -1 is zero padding
        # (valid because the conv output is post-ReLU, i.e. >= 0).
        @pl.when(i == 0)
        def _():
            ybuf[0:row, :] = jnp.zeros((row, C), ybuf.dtype)
            cp = pltpu.make_async_copy(
                y_hbm.at[pl.ds(base, (R - 1) * row)],
                ybuf.at[pl.ds(row, (R - 1) * row)],
                sem,
            )
            cp.start()
            cp.wait()

        @pl.when(i > 0)
        def _():
            start = base + (2 * i * tp - 1) * row
            cp = pltpu.make_async_copy(
                y_hbm.at[pl.ds(start, R * row)],
                ybuf.at[pl.ds(0, R * row)],
                sem,
            )
            cp.start()
            cp.wait()

        # Horizontal 3-wide max per conv row: window cols {2q-1, 2q, 2q+1}
        #   = {odd[q-1] (0 at q=0), even[q], odd[q]}
        zero = jnp.zeros((1, C), ybuf.dtype)
        hrow = []
        for r in range(R):
            ev = ybuf[r * row: r * row + pw, :]
            od = ybuf[r * row + pw: (r + 1) * row, :]
            od_l = jnp.concatenate([zero, od[:-1, :]], axis=0)
            hrow.append(jnp.maximum(jnp.maximum(ev, od), od_l))

        # Vertical 3-wide max with stride 2 over the scratch rows.
        for p in range(tp):
            v = jnp.maximum(jnp.maximum(hrow[2 * p], hrow[2 * p + 1]), hrow[2 * p + 2])
            o_ref[0, p, :, :] = v.astype(o_ref.dtype)

    return pl.pallas_call(
        kernel,
        out_shape=jax.ShapeDtypeStruct((n_img, ph, pw, C), jnp.float32),
        grid_spec=pltpu.PrefetchScalarGridSpec(
            num_scalar_prefetch=0,
            grid=(n_img, ph // tp),
            in_specs=[pl.BlockSpec(memory_space=pl.ANY)],
            out_specs=pl.BlockSpec((1, tp, pw, C), lambda n, i: (n, i, 0, 0)),
            scratch_shapes=[
                pltpu.VMEM((R * row, C), y_flat.dtype),
                pltpu.SemaphoreType.DMA,
            ],
        ),
        compiler_params=pltpu.CompilerParams(
            dimension_semantics=("parallel", "parallel")),
    )(y_flat)


# ----------------------------------------------------------------------------
# Wrapper: layout glue (im2col in bf16, BN folding, final transpose) in plain JAX
# ----------------------------------------------------------------------------
def encoder_forward(x, params):
    """x: [N, 3, H, W] float32 (NCHW). Returns [N, 64, H//4, W//4] float32."""
    w, gamma, beta, mean, var = params
    N, Cin, H, W = x.shape
    assert H % 4 == 0 and W % 4 == 0, "kernel assumes H, W divisible by 4"

    OH = (H + 2 * PAD - KH) // STRIDE + 1            # = H // 2
    OW = (W + 2 * PAD - KW) // STRIDE + 1            # = W // 2
    PH = (OH + 2 * POOL_P - POOL_K) // POOL_S + 1    # = H // 4
    PW = (OW + 2 * POOL_P - POOL_K) // POOL_S + 1    # = W // 4
    K = KH * KW * Cin

    # fold eval-mode BatchNorm: scale into the weights, shift as a bias.
    scale = gamma / jnp.sqrt(var + BN_EPS)
    shift = beta - mean * scale
    w_mat = jnp.transpose(w, (2, 3, 1, 0)).reshape(K, COUT) * scale[None, :]
    w_mat = jnp.pad(w_mat, ((0, 0), (0, CPAD - COUT))).astype(jnp.bfloat16)
    shift_p = jnp.pad(shift, (0, CPAD - COUT)).reshape(1, CPAD).astype(jnp.float32)

    # im2col in bf16.  Rows are ordered (n, oh, ow_parity, ow//2) so the conv output
    # lands directly in the W-parity-split layout the maxpool kernel consumes.
    x_nhwc = jnp.transpose(x, (0, 2, 3, 1)).astype(jnp.bfloat16)
    x_pad = jnp.pad(x_nhwc, ((0, 0), (PAD, PAD), (PAD, PAD), (0, 0)))
    per_par = []
    for p in range(2):                               # output-column parity
        taps = []
        for kh in range(KH):
            for kw in range(KW):
                c0 = 2 * p + kw
                taps.append(
                    x_pad[:, kh:kh + STRIDE * (OH - 1) + 1:STRIDE,
                             c0:c0 + 2 * STRIDE * (PW - 1) + 1:2 * STRIDE, :])
        per_par.append(jnp.stack(taps, axis=3))      # [N, OH, PW, 49, Cin]
    patches = jnp.stack(per_par, axis=2)             # [N, OH, 2, PW, 49, Cin]
    patches = patches.reshape(N * OH * 2 * PW, K)    # [M, 147]  (no K padding)

    M = patches.shape[0]
    tm = min(2048, _round_up(M, 512))                # 512..2048 row tiles
    Mp = _round_up(M, tm)
    patches = jnp.pad(patches, ((0, Mp - M), (0, 0)))

    y_flat = _conv_bn_relu_matmul(patches, w_mat, shift_p, tm)   # [Mp, 128] bf16

    tp = _pool_tile(PH)
    out_nhwc = _maxpool(y_flat, N, OH, PW, PH, tp)   # [N, PH, PW, 128] f32

    return jnp.transpose(out_nhwc[..., :COUT], (0, 3, 1, 2))     # NCHW


# ----------------------------------------------------------------------------
if __name__ == "__main__":
    key = jax.random.PRNGKey(0)
    k1, k2, k3, k4, k5, k6 = jax.random.split(key, 6)

    N, Cin, H, W = 2, 3, 32, 32
    x = jax.random.normal(k1, (N, Cin, H, W), dtype=jnp.float32)

    # deterministic synthetic parameters (shapes per ResNet-50 stem)
    w = jax.random.normal(k2, (COUT, Cin, KH, KW), dtype=jnp.float32) * 0.05
    gamma = jax.random.uniform(k3, (COUT,), minval=0.5, maxval=1.5, dtype=jnp.float32)
    beta = jax.random.normal(k4, (COUT,), dtype=jnp.float32) * 0.1
    mean = jax.random.normal(k5, (COUT,), dtype=jnp.float32) * 0.1
    var = jax.random.uniform(k6, (COUT,), minval=0.5, maxval=1.5, dtype=jnp.float32)
    params = (w, gamma, beta, mean, var)

    out = jax.jit(encoder_forward)(x, params)
    out = jax.block_until_ready(out)
    assert out.shape == (N, COUT, H // 4, W // 4), out.shape

    # pure-JAX reference on bf16-rounded inputs/weights (the Pallas path uses bf16
    # operands with f32 accumulation and stores the conv output in bf16).
    scale = gamma / jnp.sqrt(var + BN_EPS)
    shift = beta - mean * scale
    xb = x.astype(jnp.bfloat16).astype(jnp.float32)
    wb = (w * scale[:, None, None, None]).astype(jnp.bfloat16).astype(jnp.float32)
    ref = lax.conv_general_dilated(
        xb, wb, window_strides=(STRIDE, STRIDE),
        padding=((PAD, PAD), (PAD, PAD)),
        dimension_numbers=("NCHW", "OIHW", "NCHW"),
        preferred_element_type=jnp.float32,
    )
    ref = jnp.maximum(ref + shift[None, :, None, None], 0.0)
    ref = ref.astype(jnp.bfloat16).astype(jnp.float32)
    ref = lax.reduce_window(
        ref, -jnp.inf, lax.max,
        window_dimensions=(1, 1, POOL_K, POOL_K),
        window_strides=(1, 1, POOL_S, POOL_S),
        padding=((0, 0), (0, 0), (POOL_P, POOL_P), (POOL_P, POOL_P)),
    )
    err = float(jnp.max(jnp.abs(out - ref)))
    assert err < 5e-2, f"max abs err {err}"

    print("KERNEL_OK")
</pallas_src>

<mosaic_0001>
module attributes {stable_mosaic.version = 11 : i64} {
  func.func @_conv_bn_relu_kernel(%arg0: i32, %arg1: memref<512x147xbf16, #tpu.memory_space<vmem>>, %arg2: memref<147x128xbf16, #tpu.memory_space<vmem>>, %arg3: memref<1x128xf32, #tpu.memory_space<vmem>>, %arg4: memref<512x128xbf16, #tpu.memory_space<vmem>>) attributes {dimension_semantics = [#tpu.dimension_semantics<parallel>], iteration_bounds = array<i64: 1>, scalar_prefetch = 0 : i64, scratch_operands = 0 : i64, tpu.core_type = #tpu.core_type<tc>, window_params = [{transform_indices = @transform_0, window_bounds = array<i64: 512, 147>}, {pipeline_mode = #tpu.pipeline_mode<synchronous>, transform_indices = @transform_1, window_bounds = array<i64: 147, 128>}, {pipeline_mode = #tpu.pipeline_mode<synchronous>, transform_indices = @transform_2, window_bounds = array<i64: 1, 128>}, {transform_indices = @transform_3, window_bounds = array<i64: 512, 128>}]} {
    %c0 = arith.constant 0 : index
    %c0_0 = arith.constant 0 : index
    %0 = vector.load %arg1[%c0, %c0_0] : memref<512x147xbf16, #tpu.memory_space<vmem>>, vector<512x147xbf16>
    %c0_1 = arith.constant 0 : index
    %c0_2 = arith.constant 0 : index
    %1 = vector.load %arg2[%c0_1, %c0_2] : memref<147x128xbf16, #tpu.memory_space<vmem>>, vector<147x128xbf16>
    %cst = arith.constant dense<0.000000e+00> : vector<512x128xf32>
    %2 = tpu.matmul %0, %1, %cst {dimension_numbers = #tpu.dot_dimension_numbers<[1], [0], [0], [1], [0, 0, 1, 1], [], []>} : vector<512x147xbf16>, vector<147x128xbf16>, vector<512x128xf32> -> vector<512x128xf32>
    %c0_3 = arith.constant 0 : index
    %c0_4 = arith.constant 0 : index
    %3 = vector.load %arg3[%c0_3, %c0_4] : memref<1x128xf32, #tpu.memory_space<vmem>>, vector<1x128xf32>
    %4 = vector.broadcast %3 : vector<1x128xf32> to vector<512x128xf32>
    %5 = arith.addf %2, %4 : vector<512x128xf32>
    %cst_5 = arith.constant 0.000000e+00 : f32
    %6 = vector.broadcast %cst_5 : f32 to vector<512x128xf32>
    %7 = arith.maximumf %5, %6 : vector<512x128xf32>
    %8 = arith.truncf %7 : vector<512x128xf32> to vector<512x128xbf16>
    %c0_6 = arith.constant 0 : index
    %c0_7 = arith.constant 0 : index
    %9 = vector.load %arg4[%c0_6, %c0_7] : memref<512x128xbf16, #tpu.memory_space<vmem>>, vector<512x128xbf16>
    tpu.vector_store %arg4[%c0_6, %c0_7], %8 {strides = array<i32>} : memref<512x128xbf16, #tpu.memory_space<vmem>>, vector<512x128xbf16>,
    return
  }
  func.func @transform_0(%arg0: i32) -> (i32, i32) {
    %c0_i32 = arith.constant 0 : i32
    %c0_i32_0 = arith.constant 0 : i32
    return %arg0, %c0_i32 : i32, i32
  }
  func.func @transform_1(%arg0: i32) -> (i32, i32) {
    %c0_i32 = arith.constant 0 : i32
    %c0_i32_0 = arith.constant 0 : i32
    %c0_i32_1 = arith.constant 0 : i32
    return %c0_i32, %c0_i32_0 : i32, i32
  }
  func.func @transform_2(%arg0: i32) -> (i32, i32) {
    %c0_i32 = arith.constant 0 : i32
    %c0_i32_0 = arith.constant 0 : i32
    %c0_i32_1 = arith.constant 0 : i32
    return %c0_i32, %c0_i32_0 : i32, i32
  }
  func.func @transform_3(%arg0: i32) -> (i32, i32) {
    %c0_i32 = arith.constant 0 : i32
    %c0_i32_0 = arith.constant 0 : i32
    return %arg0, %c0_i32 : i32, i32
  }
}

module attributes {stable_mosaic.version = 11 : i64} {
  func.func @kernel(%arg0: i32, %arg1: i32, %arg2: memref<512x128xbf16, #tpu.memory_space<any>>, %arg3: memref<1x8x8x128xf32, #tpu.memory_space<vmem>>, %arg4: memref<272x128xbf16, #tpu.memory_space<vmem>>, %arg5: memref<!tpu.dma_semaphore, #tpu.memory_space<semaphore_mem>>) attributes {dimension_semantics = [#tpu.dimension_semantics<parallel>, #tpu.dimension_semantics<parallel>], iteration_bounds = array<i64: 2, 1>, scalar_prefetch = 0 : i64, scratch_operands = 2 : i64, tpu.core_type = #tpu.core_type<tc>, window_params = [{}, {transform_indices = @transform_1, window_bounds = array<i64: 1, 8, 8, 128>}]} {
    %c16_i32 = arith.constant 16 : i32
    %0 = arith.muli %arg0, %c16_i32 : i32
    %c16_i32_0 = arith.constant 16 : i32
    %1 = arith.muli %0, %c16_i32_0 : i32
    %c0_i32 = arith.constant 0 : i32
    %2 = arith.cmpi eq, %arg1, %c0_i32 : i32
    %3 = arith.extui %2 : i1 to i32
    %c0_i32_1 = arith.constant 0 : i32
    %4 = arith.cmpi ne, %3, %c0_i32_1 : i32
    scf.if %4 {
      %cst_63 = arith.constant 0.000000e+00 : bf16
      %159 = vector.broadcast %cst_63 : bf16 to vector<16x128xbf16>
      %c0_64 = arith.constant 0 : index
      %c0_65 = arith.constant 0 : index
      %160 = vector.load %arg4[%c0_64, %c0_65] : memref<272x128xbf16, #tpu.memory_space<vmem>>, vector<16x128xbf16>
      tpu.vector_store %arg4[%c0_64, %c0_65], %159 {strides = array<i32>} : memref<272x128xbf16, #tpu.memory_space<vmem>>, vector<16x128xbf16>,
      %c0_i32_66 = arith.constant 0 : i32
      %161 = tpu.memref_slice %arg2[%1, %c0_i32_66] : memref<512x128xbf16, #tpu.memory_space<any>> -> memref<256x128xbf16, #tpu.memory_space<any>>
      %c16_i32_67 = arith.constant 16 : i32
      %c0_i32_68 = arith.constant 0 : i32
      %162 = tpu.memref_slice %arg4[%c16_i32_67, %c0_i32_68] : memref<272x128xbf16, #tpu.memory_space<vmem>> -> memref<256x128xbf16, #tpu.memory_space<vmem>>
      tpu.enqueue_dma source(%161 : memref<256x128xbf16, #tpu.memory_space<any>>) target(%162 : memref<256x128xbf16, #tpu.memory_space<vmem>>) target_semaphore(%arg5 : memref<!tpu.dma_semaphore, #tpu.memory_space<semaphore_mem>>)
      %c0_i32_69 = arith.constant 0 : i32
      %163 = tpu.memref_slice %arg2[%1, %c0_i32_69] : memref<512x128xbf16, #tpu.memory_space<any>> -> memref<256x128xbf16, #tpu.memory_space<any>>
      %c16_i32_70 = arith.constant 16 : i32
      %c0_i32_71 = arith.constant 0 : i32
      %164 = tpu.memref_slice %arg4[%c16_i32_70, %c0_i32_71] : memref<272x128xbf16, #tpu.memory_space<vmem>> -> memref<256x128xbf16, #tpu.memory_space<vmem>>
      tpu.wait_dma2 semaphore(%arg5 : memref<!tpu.dma_semaphore, #tpu.memory_space<semaphore_mem>>) src(%163 : memref<256x128xbf16, #tpu.memory_space<any>>) dst(%164 : memref<256x128xbf16, #tpu.memory_space<vmem>>)
    } else {
    }
    %c0_i32_2 = arith.constant 0 : i32
    %5 = arith.cmpi sgt, %arg1, %c0_i32_2 : i32
    %6 = arith.extui %5 : i1 to i32
    %c0_i32_3 = arith.constant 0 : i32
    %7 = arith.cmpi ne, %6, %c0_i32_3 : i32
    scf.if %7 {
      %c2_i32 = arith.constant 2 : i32
      %159 = arith.muli %c2_i32, %arg1 : i32
      %c8_i32 = arith.constant 8 : i32
      %160 = arith.muli %159, %c8_i32 : i32
      %c1_i32 = arith.constant 1 : i32
      %161 = arith.subi %160, %c1_i32 : i32
      %c16_i32_63 = arith.constant 16 : i32
      %162 = arith.muli %161, %c16_i32_63 : i32
      %163 = arith.addi %1, %162 : i32
      %c0_i32_64 = arith.constant 0 : i32
      %164 = tpu.memref_slice %arg2[%163, %c0_i32_64] : memref<512x128xbf16, #tpu.memory_space<any>> -> memref<272x128xbf16, #tpu.memory_space<any>>
      %c0_i32_65 = arith.constant 0 : i32
      %c0_i32_66 = arith.constant 0 : i32
      %165 = tpu.memref_slice %arg4[%c0_i32_65, %c0_i32_66] : memref<272x128xbf16, #tpu.memory_space<vmem>> -> memref<272x128xbf16, #tpu.memory_space<vmem>>
      tpu.enqueue_dma source(%164 : memref<272x128xbf16, #tpu.memory_space<any>>) target(%165 : memref<272x128xbf16, #tpu.memory_space<vmem>>) target_semaphore(%arg5 : memref<!tpu.dma_semaphore, #tpu.memory_space<semaphore_mem>>)
      %c0_i32_67 = arith.constant 0 : i32
      %166 = tpu.memref_slice %arg2[%163, %c0_i32_67] : memref<512x128xbf16, #tpu.memory_space<any>> -> memref<272x128xbf16, #tpu.memory_space<any>>
      %c0_i32_68 = arith.constant 0 : i32
      %c0_i32_69 = arith.constant 0 : i32
      %167 = tpu.memref_slice %arg4[%c0_i32_68, %c0_i32_69] : memref<272x128xbf16, #tpu.memory_space<vmem>> -> memref<272x128xbf16, #tpu.memory_space<vmem>>
      tpu.wait_dma2 semaphore(%arg5 : memref<!tpu.dma_semaphore, #tpu.memory_space<semaphore_mem>>) src(%166 : memref<272x128xbf16, #tpu.memory_space<any>>) dst(%167 : memref<272x128xbf16, #tpu.memory_space<vmem>>)
    } else {
    }
    %cst = arith.constant 0.000000e+00 : bf16
    %8 = vector.broadcast %cst : bf16 to vector<1x128xbf16>
    %c0 = arith.constant 0 : index
    %c0_4 = arith.constant 0 : index
    %9 = vector.load %arg4[%c0, %c0_4] : memref<272x128xbf16, #tpu.memory_space<vmem>>, vector<8x128xbf16>
    %c8 = arith.constant 8 : index
    %c0_5 = arith.constant 0 : index
    %10 = vector.load %arg4[%c8, %c0_5] : memref<272x128xbf16, #tpu.memory_space<vmem>>, vector<8x128xbf16>
    %11 = vector.extract_strided_slice %10 {offsets = [0, 0], sizes = [7, 128], strides = [1, 1]} : vector<8x128xbf16> to vector<7x128xbf16>
    %12 = tpu.concatenate %8, %11 in 0 : vector<1x128xbf16>, vector<7x128xbf16> -> vector<8x128xbf16>
    %13 = arith.maximumf %9, %10 : vector<8x128xbf16>
    %14 = arith.maximumf %13, %12 : vector<8x128xbf16>
    %c16 = arith.constant 16 : index
    %c0_6 = arith.constant 0 : index
    %15 = vector.load %arg4[%c16, %c0_6] : memref<272x128xbf16, #tpu.memory_space<vmem>>, vector<8x128xbf16>
    %c24 = arith.constant 24 : index
    %c0_7 = arith.constant 0 : index
    %16 = vector.load %arg4[%c24, %c0_7] : memref<272x128xbf16, #tpu.memory_space<vmem>>, vector<8x128xbf16>
    %17 = vector.extract_strided_slice %16 {offsets = [0, 0], sizes = [7, 128], strides = [1, 1]} : vector<8x128xbf16> to vector<7x128xbf16>
    %18 = tpu.concatenate %8, %17 in 0 : vector<1x128xbf16>, vector<7x128xbf16> -> vector<8x128xbf16>
    %19 = arith.maximumf %15, %16 : vector<8x128xbf16>
    %20 = arith.maximumf %19, %18 : vector<8x128xbf16>
    %c32 = arith.constant 32 : index
    %c0_8 = arith.constant 0 : index
    %21 = vector.load %arg4[%c32, %c0_8] : memref<272x128xbf16, #tpu.memory_space<vmem>>, vector<8x128xbf16>
    %c40 = arith.constant 40 : index
    %c0_9 = arith.constant 0 : index
    %22 = vector.load %arg4[%c40, %c0_9] : memref<272x128xbf16, #tpu.memory_space<vmem>>, vector<8x128xbf16>
    %23 = vector.extract_strided_slice %22 {offsets = [0, 0], sizes = [7, 128], strides = [1, 1]} : vector<8x128xbf16> to vector<7x128xbf16>
    %24 = tpu.concatenate %8, %23 in 0 : vector<1x128xbf16>, vector<7x128xbf16> -> vector<8x128xbf16>
    %25 = arith.maximumf %21, %22 : vector<8x128xbf16>
    %26 = arith.maximumf %25, %24 : vector<8x128xbf16>
    %c48 = arith.constant 48 : index
    %c0_10 = arith.constant 0 : index
    %27 = vector.load %arg4[%c48, %c0_10] : memref<272x128xbf16, #tpu.memory_space<vmem>>, vector<8x128xbf16>
    %c56 = arith.constant 56 : index
    %c0_11 = arith.constant 0 : index
    %28 = vector.load %arg4[%c56, %c0_11] : memref<272x128xbf16, #tpu.memory_space<vmem>>, vector<8x128xbf16>
    %29 = vector.extract_strided_slice %28 {offsets = [0, 0], sizes = [7, 128], strides = [1, 1]} : vector<8x128xbf16> to vector<7x128xbf16>
    %30 = tpu.concatenate %8, %29 in 0 : vector<1x128xbf16>, vector<7x128xbf16> -> vector<8x128xbf16>
    %31 = arith.maximumf %27, %28 : vector<8x128xbf16>
    %32 = arith.maximumf %31, %30 : vector<8x128xbf16>
    %c64 = arith.constant 64 : index
    %c0_12 = arith.constant 0 : index
    %33 = vector.load %arg4[%c64, %c0_12] : memref<272x128xbf16, #tpu.memory_space<vmem>>, vector<8x128xbf16>
    %c72 = arith.constant 72 : index
    %c0_13 = arith.constant 0 : index
    %34 = vector.load %arg4[%c72, %c0_13] : memref<272x128xbf16, #tpu.memory_space<vmem>>, vector<8x128xbf16>
    %35 = vector.extract_strided_slice %34 {offsets = [0, 0], sizes = [7, 128], strides = [1, 1]} : vector<8x128xbf16> to vector<7x128xbf16>
    %36 = tpu.concatenate %8, %35 in 0 : vector<1x128xbf16>, vector<7x128xbf16> -> vector<8x128xbf16>
    %37 = arith.maximumf %33, %34 : vector<8x128xbf16>
    %38 = arith.maximumf %37, %36 : vector<8x128xbf16>
    %c80 = arith.constant 80 : index
    %c0_14 = arith.constant 0 : index
    %39 = vector.load %arg4[%c80, %c0_14] : memref<272x128xbf16, #tpu.memory_space<vmem>>, vector<8x128xbf16>
    %c88 = arith.constant 88 : index
    %c0_15 = arith.constant 0 : index
    %40 = vector.load %arg4[%c88, %c0_15] : memref<272x128xbf16, #tpu.memory_space<vmem>>, vector<8x128xbf16>
    %41 = vector.extract_strided_slice %40 {offsets = [0, 0], sizes = [7, 128], strides = [1, 1]} : vector<8x128xbf16> to vector<7x128xbf16>
    %42 = tpu.concatenate %8, %41 in 0 : vector<1x128xbf16>, vector<7x128xbf16> -> vector<8x128xbf16>
    %43 = arith.maximumf %39, %40 : vector<8x128xbf16>
    %44 = arith.maximumf %43, %42 : vector<8x128xbf16>
    %c96 = arith.constant 96 : index
    %c0_16 = arith.constant 0 : index
    %45 = vector.load %arg4[%c96, %c0_16] : memref<272x128xbf16, #tpu.memory_space<vmem>>, vector<8x128xbf16>
    %c104 = arith.constant 104 : index
    %c0_17 = arith.constant 0 : index
    %46 = vector.load %arg4[%c104, %c0_17] : memref<272x128xbf16, #tpu.memory_space<vmem>>, vector<8x128xbf16>
    %47 = vector.extract_strided_slice %46 {offsets = [0, 0], sizes = [7, 128], strides = [1, 1]} : vector<8x128xbf16> to vector<7x128xbf16>
    %48 = tpu.concatenate %8, %47 in 0 : vector<1x128xbf16>, vector<7x128xbf16> -> vector<8x128xbf16>
    %49 = arith.maximumf %45, %46 : vector<8x128xbf16>
    %50 = arith.maximumf %49, %48 : vector<8x128xbf16>
    %c112 = arith.constant 112 : index
    %c0_18 = arith.constant 0 : index
    %51 = vector.load %arg4[%c112, %c0_18] : memref<272x128xbf16, #tpu.memory_space<vmem>>, vector<8x128xbf16>
    %c120 = arith.constant 120 : index
    %c0_19 = arith.constant 0 : index
    %52 = vector.load %arg4[%c120, %c0_19] : memref<272x128xbf16, #tpu.memory_space<vmem>>, vector<8x128xbf16>
    %53 = vector.extract_strided_slice %52 {offsets = [0, 0], sizes = [7, 128], strides = [1, 1]} : vector<8x128xbf16> to vector<7x128xbf16>
    %54 = tpu.concatenate %8, %53 in 0 : vector<1x128xbf16>, vector<7x128xbf16> -> vector<8x128xbf16>
    %55 = arith.maximumf %51, %52 : vector<8x128xbf16>
    %56 = arith.maximumf %55, %54 : vector<8x128xbf16>
    %c128 = arith.constant 128 : index
    %c0_20 = arith.constant 0 : index
    %57 = vector.load %arg4[%c128, %c0_20] : memref<272x128xbf16, #tpu.memory_space<vmem>>, vector<8x128xbf16>
    %c136 = arith.constant 136 : index
    %c0_21 = arith.constant 0 : index
    %58 = vector.load %arg4[%c136, %c0_21] : memref<272x128xbf16, #tpu.memory_space<vmem>>, vector<8x128xbf16>
    %59 = vector.extract_strided_slice %58 {offsets = [0, 0], sizes = [7, 128], strides = [1, 1]} : vector<8x128xbf16> to vector<7x128xbf16>
    %60 = tpu.concatenate %8, %59 in 0 : vector<1x128xbf16>, vector<7x128xbf16> -> vector<8x128xbf16>
    %61 = arith.maximumf %57, %58 : vector<8x128xbf16>
    %62 = arith.maximumf %61, %60 : vector<8x128xbf16>
    %c144 = arith.constant 144 : index
    %c0_22 = arith.constant 0 : index
    %63 = vector.load %arg4[%c144, %c0_22] : memref<272x128xbf16, #tpu.memory_space<vmem>>, vector<8x128xbf16>
    %c152 = arith.constant 152 : index
    %c0_23 = arith.constant 0 : index
    %64 = vector.load %arg4[%c152, %c0_23] : memref<272x128xbf16, #tpu.memory_space<vmem>>, vector<8x128xbf16>
    %65 = vector.extract_strided_slice %64 {offsets = [0, 0], sizes = [7, 128], strides = [1, 1]} : vector<8x128xbf16> to vector<7x128xbf16>
    %66 = tpu.concatenate %8, %65 in 0 : vector<1x128xbf16>, vector<7x128xbf16> -> vector<8x128xbf16>
    %67 = arith.maximumf %63, %64 : vector<8x128xbf16>
    %68 = arith.maximumf %67, %66 : vector<8x128xbf16>
    %c160 = arith.constant 160 : index
    %c0_24 = arith.constant 0 : index
    %69 = vector.load %arg4[%c160, %c0_24] : memref<272x128xbf16, #tpu.memory_space<vmem>>, vector<8x128xbf16>
    %c168 = arith.constant 168 : index
    %c0_25 = arith.constant 0 : index
    %70 = vector.load %arg4[%c168, %c0_25] : memref<272x128xbf16, #tpu.memory_space<vmem>>, vector<8x128xbf16>
    %71 = vector.extract_strided_slice %70 {offsets = [0, 0], sizes = [7, 128], strides = [1, 1]} : vector<8x128xbf16> to vector<7x128xbf16>
    %72 = tpu.concatenate %8, %71 in 0 : vector<1x128xbf16>, vector<7x128xbf16> -> vector<8x128xbf16>
    %73 = arith.maximumf %69, %70 : vector<8x128xbf16>
    %74 = arith.maximumf %73, %72 : vector<8x128xbf16>
    %c176 = arith.constant 176 : index
    %c0_26 = arith.constant 0 : index
    %75 = vector.load %arg4[%c176, %c0_26] : memref<272x128xbf16, #tpu.memory_space<vmem>>, vector<8x128xbf16>
    %c184 = arith.constant 184 : index
    %c0_27 = arith.constant 0 : index
    %76 = vector.load %arg4[%c184, %c0_27] : memref<272x128xbf16, #tpu.memory_space<vmem>>, vector<8x128xbf16>
    %77 = vector.extract_strided_slice %76 {offsets = [0, 0], sizes = [7, 128], strides = [1, 1]} : vector<8x128xbf16> to vector<7x128xbf16>
    %78 = tpu.concatenate %8, %77 in 0 : vector<1x128xbf16>, vector<7x128xbf16> -> vector<8x128xbf16>
    %79 = arith.maximumf %75, %76 : vector<8x128xbf16>
    %80 = arith.maximumf %79, %78 : vector<8x128xbf16>
    %c192 = arith.constant 192 : index
    %c0_28 = arith.constant 0 : index
    %81 = vector.load %arg4[%c192, %c0_28] : memref<272x128xbf16, #tpu.memory_space<vmem>>, vector<8x128xbf16>
    %c200 = arith.constant 200 : index
    %c0_29 = arith.constant 0 : index
    %82 = vector.load %arg4[%c200, %c0_29] : memref<272x128xbf16, #tpu.memory_space<vmem>>, vector<8x128xbf16>
    %83 = vector.extract_strided_slice %82 {offsets = [0, 0], sizes = [7, 128], strides = [1, 1]} : vector<8x128xbf16> to vector<7x128xbf16>
    %84 = tpu.concatenate %8, %83 in 0 : vector<1x128xbf16>, vector<7x128xbf16> -> vector<8x128xbf16>
    %85 = arith.maximumf %81, %82 : vector<8x128xbf16>
    %86 = arith.maximumf %85, %84 : vector<8x128xbf16>
    %c208 = arith.constant 208 : index
    %c0_30 = arith.constant 0 : index
    %87 = vector.load %arg4[%c208, %c0_30] : memref<272x128xbf16, #tpu.memory_space<vmem>>, vector<8x128xbf16>
    %c216 = arith.constant 216 : index
    %c0_31 = arith.constant 0 : index
    %88 = vector.load %arg4[%c216, %c0_31] : memref<272x128xbf16, #tpu.memory_space<vmem>>, vector<8x128xbf16>
    %89 = vector.extract_strided_slice %88 {offsets = [0, 0], sizes = [7, 128], strides = [1, 1]} : vector<8x128xbf16> to vector<7x128xbf16>
    %90 = tpu.concatenate %8, %89 in 0 : vector<1x128xbf16>, vector<7x128xbf16> -> vector<8x128xbf16>
    %91 = arith.maximumf %87, %88 : vector<8x128xbf16>
    %92 = arith.maximumf %91, %90 : vector<8x128xbf16>
    %c224 = arith.constant 224 : index
    %c0_32 = arith.constant 0 : index
    %93 = vector.load %arg4[%c224, %c0_32] : memref<272x128xbf16, #tpu.memory_space<vmem>>, vector<8x128xbf16>
    %c232 = arith.constant 232 : index
    %c0_33 = arith.constant 0 : index
    %94 = vector.load %arg4[%c232, %c0_33] : memref<272x128xbf16, #tpu.memory_space<vmem>>, vector<8x128xbf16>
    %95 = vector.extract_strided_slice %94 {offsets = [0, 0], sizes = [7, 128], strides = [1, 1]} : vector<8x128xbf16> to vector<7x128xbf16>
    %96 = tpu.concatenate %8, %95 in 0 : vector<1x128xbf16>, vector<7x128xbf16> -> vector<8x128xbf16>
    %97 = arith.maximumf %93, %94 : vector<8x128xbf16>
    %98 = arith.maximumf %97, %96 : vector<8x128xbf16>
    %c240 = arith.constant 240 : index
    %c0_34 = arith.constant 0 : index
    %99 = vector.load %arg4[%c240, %c0_34] : memref<272x128xbf16, #tpu.memory_space<vmem>>, vector<8x128xbf16>
    %c248 = arith.constant 248 : index
    %c0_35 = arith.constant 0 : index
    %100 = vector.load %arg4[%c248, %c0_35] : memref<272x128xbf16, #tpu.memory_space<vmem>>, vector<8x128xbf16>
    %101 = vector.extract_strided_slice %100 {offsets = [0, 0], sizes = [7, 128], strides = [1, 1]} : vector<8x128xbf16> to vector<7x128xbf16>
    %102 = tpu.concatenate %8, %101 in 0 : vector<1x128xbf16>, vector<7x128xbf16> -> vector<8x128xbf16>
    %103 = arith.maximumf %99, %100 : vector<8x128xbf16>
    %104 = arith.maximumf %103, %102 : vector<8x128xbf16>
    %c256 = arith.constant 256 : index
    %c0_36 = arith.constant 0 : index
    %105 = vector.load %arg4[%c256, %c0_36] : memref<272x128xbf16, #tpu.memory_space<vmem>>, vector<8x128xbf16>
    %c264 = arith.constant 264 : index
    %c0_37 = arith.constant 0 : index
    %106 = vector.load %arg4[%c264, %c0_37] : memref<272x128xbf16, #tpu.memory_space<vmem>>, vector<8x128xbf16>
    %107 = vector.extract_strided_slice %106 {offsets = [0, 0], sizes = [7, 128], strides = [1, 1]} : vector<8x128xbf16> to vector<7x128xbf16>
    %108 = tpu.concatenate %8, %107 in 0 : vector<1x128xbf16>, vector<7x128xbf16> -> vector<8x128xbf16>
    %109 = arith.maximumf %105, %106 : vector<8x128xbf16>
    %110 = arith.maximumf %109, %108 : vector<8x128xbf16>
    %111 = arith.maximumf %14, %20 : vector<8x128xbf16>
    %112 = arith.maximumf %111, %26 : vector<8x128xbf16>
    %113 = arith.extf %112 : vector<8x128xbf16> to vector<8x128xf32>
    %c0_38 = arith.constant 0 : index
    %c0_39 = arith.constant 0 : index
    %c0_40 = arith.constant 0 : index
    %c0_41 = arith.constant 0 : index
    %114 = vector.load %arg3[%c0_38, %c0_39, %c0_40, %c0_41] : memref<1x8x8x128xf32, #tpu.memory_space<vmem>>, vector<1x1x8x128xf32>
    %115 = vector.shape_cast %114 : vector<1x1x8x128xf32> to vector<8x128xf32>
    %116 = vector.shape_cast %113 : vector<8x128xf32> to vector<1x1x8x128xf32>
    tpu.vector_store %arg3[%c0_38, %c0_39, %c0_40, %c0_41], %116 {strides = array<i32>} : memref<1x8x8x128xf32, #tpu.memory_space<vmem>>, vector<1x1x8x128xf32>,
    %117 = arith.maximumf %26, %32 : vector<8x128xbf16>
    %118 = arith.maximumf %117, %38 : vector<8x128xbf16>
    %119 = arith.extf %118 : vector<8x128xbf16> to vector<8x128xf32>
    %c0_42 = arith.constant 0 : index
    %c1 = arith.constant 1 : index
    %c0_43 = arith.constant 0 : index
    %c0_44 = arith.constant 0 : index
    %120 = vector.load %arg3[%c0_42, %c1, %c0_43, %c0_44] : memref<1x8x8x128xf32, #tpu.memory_space<vmem>>, vector<1x1x8x128xf32>
    %121 = vector.shape_cast %120 : vector<1x1x8x128xf32> to vector<8x128xf32>
    %122 = vector.shape_cast %119 : vector<8x128xf32> to vector<1x1x8x128xf32>
    tpu.vector_store %arg3[%c0_42, %c1, %c0_43, %c0_44], %122 {strides = array<i32>} : memref<1x8x8x128xf32, #tpu.memory_space<vmem>>, vector<1x1x8x128xf32>,
    %123 = arith.maximumf %38, %44 : vector<8x128xbf16>
    %124 = arith.maximumf %123, %50 : vector<8x128xbf16>
    %125 = arith.extf %124 : vector<8x128xbf16> to vector<8x128xf32>
    %c0_45 = arith.constant 0 : index
    %c2 = arith.constant 2 : index
    %c0_46 = arith.constant 0 : index
    %c0_47 = arith.constant 0 : index
    %126 = vector.load %arg3[%c0_45, %c2, %c0_46, %c0_47] : memref<1x8x8x128xf32, #tpu.memory_space<vmem>>, vector<1x1x8x128xf32>
    %127 = vector.shape_cast %126 : vector<1x1x8x128xf32> to vector<8x128xf32>
    %128 = vector.shape_cast %125 : vector<8x128xf32> to vector<1x1x8x128xf32>
    tpu.vector_store %arg3[%c0_45, %c2, %c0_46, %c0_47], %128 {strides = array<i32>} : memref<1x8x8x128xf32, #tpu.memory_space<vmem>>, vector<1x1x8x128xf32>,
    %129 = arith.maximumf %50, %56 : vector<8x128xbf16>
    %130 = arith.maximumf %129, %62 : vector<8x128xbf16>
    %131 = arith.extf %130 : vector<8x128xbf16> to vector<8x128xf32>
    %c0_48 = arith.constant 0 : index
    %c3 = arith.constant 3 : index
    %c0_49 = arith.constant 0 : index
    %c0_50 = arith.constant 0 : index
    %132 = vector.load %arg3[%c0_48, %c3, %c0_49, %c0_50] : memref<1x8x8x128xf32, #tpu.memory_space<vmem>>, vector<1x1x8x128xf32>
    %133 = vector.shape_cast %132 : vector<1x1x8x128xf32> to vector<8x128xf32>
    %134 = vector.shape_cast %131 : vector<8x128xf32> to vector<1x1x8x128xf32>
    tpu.vector_store %arg3[%c0_48, %c3, %c0_49, %c0_50], %134 {strides = array<i32>} : memref<1x8x8x128xf32, #tpu.memory_space<vmem>>, vector<1x1x8x128xf32>,
    %135 = arith.maximumf %62, %68 : vector<8x128xbf16>
    %136 = arith.maximumf %135, %74 : vector<8x128xbf16>
    %137 = arith.extf %136 : vector<8x128xbf16> to vector<8x128xf32>
    %c0_51 = arith.constant 0 : index
    %c4 = arith.constant 4 : index
    %c0_52 = arith.constant 0 : index
    %c0_53 = arith.constant 0 : index
    %138 = vector.load %arg3[%c0_51, %c4, %c0_52, %c0_53] : memref<1x8x8x128xf32, #tpu.memory_space<vmem>>, vector<1x1x8x128xf32>
    %139 = vector.shape_cast %138 : vector<1x1x8x128xf32> to vector<8x128xf32>
    %140 = vector.shape_cast %137 : vector<8x128xf32> to vector<1x1x8x128xf32>
    tpu.vector_store %arg3[%c0_51, %c4, %c0_52, %c0_53], %140 {strides = array<i32>} : memref<1x8x8x128xf32, #tpu.memory_space<vmem>>, vector<1x1x8x128xf32>,
    %141 = arith.maximumf %74, %80 : vector<8x128xbf16>
    %142 = arith.maximumf %141, %86 : vector<8x128xbf16>
    %143 = arith.extf %142 : vector<8x128xbf16> to vector<8x128xf32>
    %c0_54 = arith.constant 0 : index
    %c5 = arith.constant 5 : index
    %c0_55 = arith.constant 0 : index
    %c0_56 = arith.constant 0 : index
    %144 = vector.load %arg3[%c0_54, %c5, %c0_55, %c0_56] : memref<1x8x8x128xf32, #tpu.memory_space<vmem>>, vector<1x1x8x128xf32>
    %145 = vector.shape_cast %144 : vector<1x1x8x128xf32> to vector<8x128xf32>
    %146 = vector.shape_cast %143 : vector<8x128xf32> to vector<1x1x8x128xf32>
    tpu.vector_store %arg3[%c0_54, %c5, %c0_55, %c0_56], %146 {strides = array<i32>} : memref<1x8x8x128xf32, #tpu.memory_space<vmem>>, vector<1x1x8x128xf32>,
    %147 = arith.maximumf %86, %92 : vector<8x128xbf16>
    %148 = arith.maximumf %147, %98 : vector<8x128xbf16>
    %149 = arith.extf %148 : vector<8x128xbf16> to vector<8x128xf32>
    %c0_57 = arith.constant 0 : index
    %c6 = arith.constant 6 : index
    %c0_58 = arith.constant 0 : index
    %c0_59 = arith.constant 0 : index
    %150 = vector.load %arg3[%c0_57, %c6, %c0_58, %c0_59] : memref<1x8x8x128xf32, #tpu.memory_space<vmem>>, vector<1x1x8x128xf32>
    %151 = vector.shape_cast %150 : vector<1x1x8x128xf32> to vector<8x128xf32>
    %152 = vector.shape_cast %149 : vector<8x128xf32> to vector<1x1x8x128xf32>
    tpu.vector_store %arg3[%c0_57, %c6, %c0_58, %c0_59], %152 {strides = array<i32>} : memref<1x8x8x128xf32, #tpu.memory_space<vmem>>, vector<1x1x8x128xf32>,
    %153 = arith.maximumf %98, %104 : vector<8x128xbf16>
    %154 = arith.maximumf %153, %110 : vector<8x128xbf16>
    %155 = arith.extf %154 : vector<8x128xbf16> to vector<8x128xf32>
    %c0_60 = arith.constant 0 : index
    %c7 = arith.constant 7 : index
    %c0_61 = arith.constant 0 : index
    %c0_62 = arith.constant 0 : index
    %156 = vector.load %arg3[%c0_60, %c7, %c0_61, %c0_62] : memref<1x8x8x128xf32, #tpu.memory_space<vmem>>, vector<1x1x8x128xf32>
    %157 = vector.shape_cast %156 : vector<1x1x8x128xf32> to vector<8x128xf32>
    %158 = vector.shape_cast %155 : vector<8x128xf32> to vector<1x1x8x128xf32>
    tpu.vector_store %arg3[%c0_60, %c7, %c0_61, %c0_62], %158 {strides = array<i32>} : memref<1x8x8x128xf32, #tpu.memory_space<vmem>>, vector<1x1x8x128xf32>,
    return
  }
  func.func @transform_1(%arg0: i32, %arg1: i32) -> (i32, i32, i32, i32) {
    %c0_i32 = arith.constant 0 : i32
    %c0_i32_0 = arith.constant 0 : i32
    %c0_i32_1 = arith.constant 0 : i32
    return %arg0, %arg1, %c0_i32, %c0_i32_0 : i32, i32, i32, i32
  }
}

</mosaic_0001>

<llo_original>
// kernel: encoder_forward.3
$region0: #{encoder_forward.3}
  #allocation0 [shape = 'u32[]', space=smem, size = 0x4, offset = 0x4, fixed_abs, tag = 'smem constant byte address 0x4 - core index']
  #allocation1 [shape = 'u32[144,128]{1,0:T(1,128)}', space=vmem, size = 0x12000, scoped, tag = 'internal scratch']
  #allocation2 [shape = 'bf16[272,128]{1,0:T(16,128)(2,1)}', space=vmem, size = 0x11000, scoped, tag = 'scratch operand']
  #allocation3 [shape = 's32[1]{0}', space=sflag, size = 0x4, scoped, tag = 'scratch operand']
  #allocation4 [shape = 's32[]', space=sflag, size = 0x4, offset = 0, fixed_abs, tag = 'sflag constant byte address 0x0 - dummy sync flag']
  #allocation5 [shape = 's32[]', space=sflag, size = 0x4, offset = 0, fixed_abs, tag = 'sflag constant byte address 0x0 - dummy sync flag']
  %s0 = inlined_call_operand.vmem [shape: bf16[512,128], index: 0, kind: input, shape index: {}]
  %s1 = inlined_call_operand.vmem [shape: f32[2,8,8,128], index: 1, kind: output, shape index: {}]
  %s2 = sld [smem:[#allocation0]]
  $region101: #{encoder_forward.3} parent=0
    _
  %s4 = ssub.s32 1, %s2
  %s5 = scalar_select 0, %s4, %s2
  loop: start=0, step=1, limit=3
  $region2: #{encoder_forward.3} parent=0 // loop_pre_header
    _
  $region3: #{encoder_forward.3} parent=0 // loop_header
    %s7 = sphi 0, %s11
    %p8 = scmp.ge.s32.totalorder %s7, 3
    %s13 = sphi 0, %s23
    %s14 = sphi 0, %s19
    %s15 = sphi 0, %s13
    %s16 = sphi 0, %s14
    %s28 = sphi 0, %s30
    %s31 = sphi 0, %s28
    %s41 = sphi 0, %s31
  $region4: #{encoder_forward.3} parent=0 // loop_header_branch
    %10 = sbr.rel (%p8) target = $region8
  $region5: #{encoder_forward.3} parent=0 // loop_body
    %s12 = ssub.s32 %s7, 1
    %s17 = sadd.s32 1, %s14
    %p18 = scmp.ge.s32.totalorder %s17, 1
    %s19 = scalar_select %p18, 0, %s17
    %s20 = sadd.s32 1, %s13
    %s21 = scalar_select %p18, %s20, %s13
    %p22 = scmp.ge.s32.totalorder %s21, 2
    %s23 = scalar_select %p22, 0, %s21
    %s24 = ssub.s32 %s13, %s23
    %s25 = ssub.s32 %s14, %s19
    %s26 = sor.u32 %s24, %s25
    %p27 = scmp.eq.s32.totalorder %s26, 0
    %s29 = sadd.s32 %s28, 1
    %s30 = scalar_select %p27, %s28, %s29
    %p32 = pneg %p27
    %p33 = scmp.eq.s32.totalorder %s7, 1
    %p34 = por %p32, %p33
    %p35 = scmp.ne.s32.totalorder %s28, %s31
    %p36 = scmp.eq.s32.totalorder %s7, 0
    %p37 = por %p35, %p36
    %p38 = scmp.ne.s32.totalorder %s28, %s31
    %p39 = scmp.eq.s32.totalorder %s12, 1
    %p40 = por %p38, %p39
    %p42 = scmp.ne.s32.totalorder %s31, %s41
    %p43 = scmp.eq.s32.totalorder %s12, 0
    %p44 = por %p42, %p43
    %p45 = scmp.lt.s32.totalorder %s7, 2
    // Predicated region
    $region9: #{encoder_forward.3} parent=5 // pred_check
      %p46 = pneg %p45
    $region10: #{encoder_forward.3} parent=5 // pred_check_branch
      %48 = sbr.rel (%p46) target = $region12
    $region11: #{encoder_forward.3} parent=5 // pred_region
      %p49 = pneg %p37
      %p50 = pneg %p34
      %s51 = smul.u32 8, %s14
      %p52 = scmp.lt.s32.totalorder %s13, 1
      %s53 = scalar_select %p52, %s13, 1
      %p54 = scmp.lt.s32.totalorder %s51, 7
      %s55 = scalar_select %p54, %s51, 7
      %s56 = smul.addr %s53, 8
      %s57 = sadd.s32 %s55, %s56
      %s58 = smul.addr %s57, 8
      %s59 = scalar_lea.vmem %s1, %s58
      %s60 = smul.u32 8, %s14
      %p61 = scmp.lt.s32.totalorder %s13, 1
      %s62 = scalar_select %p61, %s13, 1
      %p63 = scmp.lt.s32.totalorder %s60, 7
      %s64 = scalar_select %p63, %s60, 7
      %s65 = smul.addr %s62, 8
      %s66 = sadd.s32 %s64, %s65
      %s67 = smul.addr %s66, 8
      %s68 = scalar_lea.vmem %s1, %s67
      %s69 = smul.u32 8, %s14
      %s71 = smul.u32 %s13, 256
      %p72 = scmp.eq.s32.totalorder %s14, 0
      // Predicated region
      $region13: #{encoder_forward.3} parent=11 // pred_check
        %p73 = pneg %p72
      $region14: #{encoder_forward.3} parent=11 // pred_check_branch
        %75 = sbr.rel (%p73) target = $region16
      $region15: #{encoder_forward.3} parent=11 // pred_region
        %76 = vst [vmem:[#allocation2] sm:$0xff] 0
        %s77 = sshra.s32 %s71, 3
        %s78 = sand.u32 %s71, 7
        %s79 = smul.addr %s77, 4
        %s80 = scalar_lea.vmem %s0, %s79
        %s81 = scalar_lea.vmem [#allocation2], 8
        %p83 = scmp.lt.u32.totalorder 128, 8
        %p84 = pneg %p83
        // Predicated region
        $region17: #{encoder_forward.3} parent=15 // pred_check
          _
        $region18: #{encoder_forward.3} parent=15 // pred_check_branch
          %86 = sbr.rel (%p83) target = $region20
        $region19: #{encoder_forward.3} parent=15 // pred_region
          %s101 = sand.u32 128, 7
          %p102 = scmp.eq.s32.totalorder %s101, 0
          // Predicated region
          $region32: #{encoder_forward.3} parent=19 // pred_check
            %p103 = pneg %p102
          $region33: #{encoder_forward.3} parent=19 // pred_check_branch
            %105 = sbr.rel (%p103) target = $region35
          $region34: #{encoder_forward.3} parent=19 // pred_region
            loop: start=0, step=1, limit=1
            $region36: #{encoder_forward.3} parent=34 // loop_pre_header
              _
            $region37: #{encoder_forward.3} parent=34 // loop_header
              %s107 = sphi 0, %s111
              %p108 = scmp.ge.s32.totalorder %s107, 1
              %s112 = sphi %s80, %s80
              %s113 = sphi %s81, %s81
            $region38: #{encoder_forward.3} parent=34 // loop_header_branch
              %110 = sbr.rel (%p108) target = $region42
            $region39: #{encoder_forward.3} parent=34 // loop_body
              %v114 = vld [vmem:[%s112] sm:$0xff]
              %115 = vst [vmem:[%s113] sm:$0xff] %v114
              %v116 = vld [vmem:[%s112 + $0x8] sm:$0xff]
              %117 = vst [vmem:[%s113 + $0x8] sm:$0xff] %v116
              %v118 = vld [vmem:[%s112 + $0x10] sm:$0xff]
              %119 = vst [vmem:[%s113 + $0x10] sm:$0xff] %v118
              %v120 = vld [vmem:[%s112 + $0x18] sm:$0xff]
              %121 = vst [vmem:[%s113 + $0x18] sm:$0xff] %v120
              %v122 = vld [vmem:[%s112 + $0x20] sm:$0xff]
              %123 = vst [vmem:[%s113 + $0x20] sm:$0xff] %v122
              %v124 = vld [vmem:[%s112 + $0x28] sm:$0xff]
              %125 = vst [vmem:[%s113 + $0x28] sm:$0xff] %v124
              %v126 = vld [vmem:[%s112 + $0x30] sm:$0xff]
              %127 = vst [vmem:[%s113 + $0x30] sm:$0xff] %v126
              %v128 = vld [vmem:[%s112 + $0x38] sm:$0xff]
              %129 = vst [vmem:[%s113 + $0x38] sm:$0xff] %v128
              %v130 = vld [vmem:[%s112 + $0x40] sm:$0xff]
              %131 = vst [vmem:[%s113 + $0x40] sm:$0xff] %v130
              %v132 = vld [vmem:[%s112 + $0x48] sm:$0xff]
              %133 = vst [vmem:[%s113 + $0x48] sm:$0xff] %v132
              %v134 = vld [vmem:[%s112 + $0x50] sm:$0xff]
              %135 = vst [vmem:[%s113 + $0x50] sm:$0xff] %v134
              %v136 = vld [vmem:[%s112 + $0x58] sm:$0xff]
              %137 = vst [vmem:[%s113 + $0x58] sm:$0xff] %v136
              %v138 = vld [vmem:[%s112 + $0x60] sm:$0xff]
              %139 = vst [vmem:[%s113 + $0x60] sm:$0xff] %v138
              %v140 = vld [vmem:[%s112 + $0x68] sm:$0xff]
              %141 = vst [vmem:[%s113 + $0x68] sm:$0xff] %v140
              %v142 = vld [vmem:[%s112 + $0x70] sm:$0xff]
              %143 = vst [vmem:[%s113 + $0x70] sm:$0xff] %v142
              %v144 = vld [vmem:[%s112 + $0x78] sm:$0xff]
              %145 = vst [vmem:[%s113 + $0x78] sm:$0xff] %v144
            $region40: #{encoder_forward.3} parent=34 // loop_footer
              %s111 = sadd.s32 1, %s107
            $region41: #{encoder_forward.3} parent=34 // loop_footer_branch
              %106 = sbr.rel target = $region37
            $region42: #{encoder_forward.3} parent=34 // loop_exit
              _
          $region35: #{encoder_forward.3} parent=19 // pred_fallthru
            _
          %p146 = pneg %p102
          // Predicated region
          $region43: #{encoder_forward.3} parent=19 // pred_check
            _
          $region44: #{encoder_forward.3} parent=19 // pred_check_branch
            %148 = sbr.rel (%p102) target = $region46
          $region45: #{encoder_forward.3} parent=19 // pred_region
            %s149 = sand.u32 128, 7
          $region46: #{encoder_forward.3} parent=19 // pred_fallthru
            _
        $region20: #{encoder_forward.3} parent=15 // pred_fallthru
          _
        // Predicated region
        $region21: #{encoder_forward.3} parent=15 // pred_check
          %p87 = pneg %p83
        $region22: #{encoder_forward.3} parent=15 // pred_check_branch
          %89 = sbr.rel (%p87) target = $region24
        $region23: #{encoder_forward.3} parent=15 // pred_region
          %s90 = sshllo.u32 0, 128
          loop: start=0, step=1, limit=1
          $region25: #{encoder_forward.3} parent=23 // loop_pre_header
            _
          $region26: #{encoder_forward.3} parent=23 // loop_header
            %s92 = sphi 0, %s96
            %p93 = scmp.ge.s32.totalorder %s92, 1
            %s97 = sphi %s80, %s80
            %s98 = sphi %s81, %s81
          $region27: #{encoder_forward.3} parent=23 // loop_header_branch
            %95 = sbr.rel (%p93) target = $region31
          $region28: #{encoder_forward.3} parent=23 // loop_body
            %v99 = vld [vmem:[%s97] sm:%s90]
            %100 = vst [vmem:[%s98] sm:%s90] %v99
          $region29: #{encoder_forward.3} parent=23 // loop_footer
            %s96 = sadd.s32 1, %s92
          $region30: #{encoder_forward.3} parent=23 // loop_footer_branch
            %91 = sbr.rel target = $region26
          $region31: #{encoder_forward.3} parent=23 // loop_exit
            _
        $region24: #{encoder_forward.3} parent=15 // pred_fallthru
          _
        // Predicated region
        $region47: #{encoder_forward.3} parent=15 // pred_check
          _
        $region48: #{encoder_forward.3} parent=15 // pred_check_branch
          %152 = sbr.rel (0) target = $region50
        $region49: #{encoder_forward.3} parent=15 // pred_region
          %153 = vsyncadd [#allocation3], 2048
        $region50: #{encoder_forward.3} parent=15 // pred_fallthru
          _
        %s154 = smul.u32 4, 32
        %s155 = smul.u32 %s154, 1
        %s156 = sshll.u32 %s155, 4
        %157 = dma.done [#allocation3], %s156
      $region16: #{encoder_forward.3} parent=11 // pred_fallthru
        _
      %p158 = scmp.gt.s32.totalorder %s14, 0
      // Predicated region
      $region51: #{encoder_forward.3} parent=11 // pred_check
        %p159 = pneg %p158
      $region52: #{encoder_forward.3} parent=11 // pred_check_branch
        %161 = sbr.rel (%p159) target = $region54
      $region53: #{encoder_forward.3} parent=11 // pred_region
        %s162 = smul.u32 %s14, 16
        %s163 = ssub.s32 %s162, 1
        %s164 = smul.u32 %s163, 16
        %s165 = sadd.s32 %s71, %s164
        %s166 = sshra.s32 %s165, 3
        %s167 = sand.u32 %s165, 7
        %s168 = smul.addr %s166, 4
        %s169 = scalar_lea.vmem %s0, %s168
        %p171 = scmp.lt.u32.totalorder 136, 8
        %p172 = pneg %p171
        // Predicated region
        $region55: #{encoder_forward.3} parent=53 // pred_check
          _
        $region56: #{encoder_forward.3} parent=53 // pred_check_branch
          %174 = sbr.rel (%p171) target = $region58
        $region57: #{encoder_forward.3} parent=53 // pred_region
          %s189 = sand.u32 136, 7
          %p190 = scmp.eq.s32.totalorder %s189, 0
          // Predicated region
          $region70: #{encoder_forward.3} parent=57 // pred_check
            %p191 = pneg %p190
          $region71: #{encoder_forward.3} parent=57 // pred_check_branch
            %193 = sbr.rel (%p191) target = $region73
          $region72: #{encoder_forward.3} parent=57 // pred_region
            loop: start=0, step=1, limit=1
            $region74: #{encoder_forward.3} parent=72 // loop_pre_header
              _
            $region75: #{encoder_forward.3} parent=72 // loop_header
              %s195 = sphi 0, %s199
              %p196 = scmp.ge.s32.totalorder %s195, 1
              %s200 = sphi %s169, %s169
              %s201 = sphi [#allocation2], [#allocation2]
            $region76: #{encoder_forward.3} parent=72 // loop_header_branch
              %198 = sbr.rel (%p196) target = $region80
            $region77: #{encoder_forward.3} parent=72 // loop_body
              %v202 = vld [vmem:[%s200] sm:$0xff]
              %203 = vst [vmem:[%s201] sm:$0xff] %v202
              %v204 = vld [vmem:[%s200 + $0x8] sm:$0xff]
              %205 = vst [vmem:[%s201 + $0x8] sm:$0xff] %v204
              %v206 = vld [vmem:[%s200 + $0x10] sm:$0xff]
              %207 = vst [vmem:[%s201 + $0x10] sm:$0xff] %v206
              %v208 = vld [vmem:[%s200 + $0x18] sm:$0xff]
              %209 = vst [vmem:[%s201 + $0x18] sm:$0xff] %v208
              %v210 = vld [vmem:[%s200 + $0x20] sm:$0xff]
              %211 = vst [vmem:[%s201 + $0x20] sm:$0xff] %v210
              %v212 = vld [vmem:[%s200 + $0x28] sm:$0xff]
              %213 = vst [vmem:[%s201 + $0x28] sm:$0xff] %v212
              %v214 = vld [vmem:[%s200 + $0x30] sm:$0xff]
              %215 = vst [vmem:[%s201 + $0x30] sm:$0xff] %v214
              %v216 = vld [vmem:[%s200 + $0x38] sm:$0xff]
              %217 = vst [vmem:[%s201 + $0x38] sm:$0xff] %v216
              %v218 = vld [vmem:[%s200 + $0x40] sm:$0xff]
              %219 = vst [vmem:[%s201 + $0x40] sm:$0xff] %v218
              %v220 = vld [vmem:[%s200 + $0x48] sm:$0xff]
              %221 = vst [vmem:[%s201 + $0x48] sm:$0xff] %v220
              %v222 = vld [vmem:[%s200 + $0x50] sm:$0xff]
              %223 = vst [vmem:[%s201 + $0x50] sm:$0xff] %v222
              %v224 = vld [vmem:[%s200 + $0x58] sm:$0xff]
              %225 = vst [vmem:[%s201 + $0x58] sm:$0xff] %v224
              %v226 = vld [vmem:[%s200 + $0x60] sm:$0xff]
              %227 = vst [vmem:[%s201 + $0x60] sm:$0xff] %v226
              %v228 = vld [vmem:[%s200 + $0x68] sm:$0xff]
              %229 = vst [vmem:[%s201 + $0x68] sm:$0xff] %v228
              %v230 = vld [vmem:[%s200 + $0x70] sm:$0xff]
              %231 = vst [vmem:[%s201 + $0x70] sm:$0xff] %v230
              %v232 = vld [vmem:[%s200 + $0x78] sm:$0xff]
              %233 = vst [vmem:[%s201 + $0x78] sm:$0xff] %v232
              %v234 = vld [vmem:[%s200 + $0x80] sm:$0xff]
              %235 = vst [vmem:[%s201 + $0x80] sm:$0xff] %v234
            $region78: #{encoder_forward.3} parent=72 // loop_footer
              %s199 = sadd.s32 1, %s195
            $region79: #{encoder_forward.3} parent=72 // loop_footer_branch
              %194 = sbr.rel target = $region75
            $region80: #{encoder_forward.3} parent=72 // loop_exit
              _
          $region73: #{encoder_forward.3} parent=57 // pred_fallthru
            _
          %p236 = pneg %p190
          // Predicated region
          $region81: #{encoder_forward.3} parent=57 // pred_check
            _
          $region82: #{encoder_forward.3} parent=57 // pred_check_branch
            %238 = sbr.rel (%p190) target = $region84
          $region83: #{encoder_forward.3} parent=57 // pred_region
            %s239 = sand.u32 136, 7
          $region84: #{encoder_forward.3} parent=57 // pred_fallthru
            _
        $region58: #{encoder_forward.3} parent=53 // pred_fallthru
          _
        // Predicated region
        $region59: #{encoder_forward.3} parent=53 // pred_check
          %p175 = pneg %p171
        $region60: #{encoder_forward.3} parent=53 // pred_check_branch
          %177 = sbr.rel (%p175) target = $region62
        $region61: #{encoder_forward.3} parent=53 // pred_region
          %s178 = sshllo.u32 0, 136
          loop: start=0, step=1, limit=1
          $region63: #{encoder_forward.3} parent=61 // loop_pre_header
            _
          $region64: #{encoder_forward.3} parent=61 // loop_header
            %s180 = sphi 0, %s184
            %p181 = scmp.ge.s32.totalorder %s180, 1
            %s185 = sphi %s169, %s169
            %s186 = sphi [#allocation2], [#allocation2]
          $region65: #{encoder_forward.3} parent=61 // loop_header_branch
            %183 = sbr.rel (%p181) target = $region69
          $region66: #{encoder_forward.3} parent=61 // loop_body
            %v187 = vld [vmem:[%s185] sm:%s178]
            %188 = vst [vmem:[%s186] sm:%s178] %v187
          $region67: #{encoder_forward.3} parent=61 // loop_footer
            %s184 = sadd.s32 1, %s180
          $region68: #{encoder_forward.3} parent=61 // loop_footer_branch
            %179 = sbr.rel target = $region64
          $region69: #{encoder_forward.3} parent=61 // loop_exit
            _
        $region62: #{encoder_forward.3} parent=53 // pred_fallthru
          _
        // Predicated region
        $region85: #{encoder_forward.3} parent=53 // pred_check
          _
        $region86: #{encoder_forward.3} parent=53 // pred_check_branch
          %242 = sbr.rel (0) target = $region88
        $region87: #{encoder_forward.3} parent=53 // pred_region
          %243 = vsyncadd [#allocation3], 2176
        $region88: #{encoder_forward.3} parent=53 // pred_fallthru
          _
        %s244 = smul.u32 4, 34
        %s245 = smul.u32 %s244, 1
        %s246 = sshll.u32 %s245, 4
        %247 = dma.done [#allocation3], %s246
      $region54: #{encoder_forward.3} parent=11 // pred_fallthru
        _
      %v248 = vld [vmem:[#allocation2] sm:$0xf]
      %v249 = vld [vmem:[#allocation2] sm:$0xf0]
      %v251 = vshrl.u32 %v249, 16
      %v253 = vrot.slane %v251, 3
      %v254 = vshll.u32 %v249, 16
      %v256 = vrot.slane %v254, 4
      %v257 = vor.u32 %v253, %v256
      %vm259 = vcmask 1040384
      %vm260 = vsmask.f32 256
      %vm261 = vmand %vm259, %vm260
      %v262 = vsel %vm261, 0, %v257
      %v264 = vrot.slane %v249, 4
      %v266 = vmax.bf16 %v248, %v264
      %v267 = vmax.bf16 %v266, %v262
      %v268 = vld [vmem:[#allocation2 + $0x8] sm:$0xf]
      %v269 = vld [vmem:[#allocation2 + $0x8] sm:$0xf0]
      %v271 = vshrl.u32 %v269, 16
      %v273 = vrot.slane %v271, 3
      %v274 = vshll.u32 %v269, 16
      %v276 = vrot.slane %v274, 4
      %v277 = vor.u32 %v273, %v276
      %v279 = vsel %vm261, 0, %v277
      %v281 = vrot.slane %v269, 4
      %v283 = vmax.bf16 %v268, %v281
      %v284 = vmax.bf16 %v283, %v279
      %v285 = vld [vmem:[#allocation2 + $0x10] sm:$0xf]
      %v286 = vld [vmem:[#allocation2 + $0x10] sm:$0xf0]
      %v288 = vshrl.u32 %v286, 16
      %v290 = vrot.slane %v288, 3
      %v291 = vshll.u32 %v286, 16
      %v293 = vrot.slane %v291, 4
      %v294 = vor.u32 %v290, %v293
      %v296 = vsel %vm261, 0, %v294
      %v298 = vrot.slane %v286, 4
      %v300 = vmax.bf16 %v285, %v298
      %v301 = vmax.bf16 %v300, %v296
      %v302 = vld [vmem:[#allocation2 + $0x18] sm:$0xf]
      %v303 = vld [vmem:[#allocation2 + $0x18] sm:$0xf0]
      %v305 = vshrl.u32 %v303, 16
      %v307 = vrot.slane %v305, 3
      %v308 = vshll.u32 %v303, 16
      %v310 = vrot.slane %v308, 4
      %v311 = vor.u32 %v307, %v310
      %v313 = vsel %vm261, 0, %v311
      %v315 = vrot.slane %v303, 4
      %v317 = vmax.bf16 %v302, %v315
      %v318 = vmax.bf16 %v317, %v313
      %v319 = vld [vmem:[#allocation2 + $0x20] sm:$0xf]
      %v320 = vld [vmem:[#allocation2 + $0x20] sm:$0xf0]
      %v322 = vshrl.u32 %v320, 16
      %v324 = vrot.slane %v322, 3
      %v325 = vshll.u32 %v320, 16
      %v327 = vrot.slane %v325, 4
      %v328 = vor.u32 %v324, %v327
      %v330 = vsel %vm261, 0, %v328
      %v332 = vrot.slane %v320, 4
      %v334 = vmax.bf16 %v319, %v332
      %v335 = vmax.bf16 %v334, %v330
      %v336 = vld [vmem:[#allocation2 + $0x28] sm:$0xf]
      %v337 = vld [vmem:[#allocation2 + $0x28] sm:$0xf0]
      %v339 = vshrl.u32 %v337, 16
      %v341 = vrot.slane %v339, 3
      %v342 = vshll.u32 %v337, 16
      %v344 = vrot.slane %v342, 4
      %v345 = vor.u32 %v341, %v344
      %v347 = vsel %vm261, 0, %v345
      %v349 = vrot.slane %v337, 4
      %v351 = vmax.bf16 %v336, %v349
      %v352 = vmax.bf16 %v351, %v347
      %v353 = vld [vmem:[#allocation2 + $0x30] sm:$0xf]
      %v354 = vld [vmem:[#allocation2 + $0x30] sm:$0xf0]
      %v356 = vshrl.u32 %v354, 16
      %v358 = vrot.slane %v356, 3
      %v359 = vshll.u32 %v354, 16
      %v361 = vrot.slane %v359, 4
      %v362 = vor.u32 %v358, %v361
      %v364 = vsel %vm261, 0, %v362
      %v366 = vrot.slane %v354, 4
      %v368 = vmax.bf16 %v353, %v366
      %v369 = vmax.bf16 %v368, %v364
      %v370 = vld [vmem:[#allocation2 + $0x38] sm:$0xf]
      %v371 = vld [vmem:[#allocation2 + $0x38] sm:$0xf0]
      %v373 = vshrl.u32 %v371, 16
      %v375 = vrot.slane %v373, 3
      %v376 = vshll.u32 %v371, 16
      %v378 = vrot.slane %v376, 4
      %v379 = vor.u32 %v375, %v378
      %v381 = vsel %vm261, 0, %v379
      %v383 = vrot.slane %v371, 4
      %v385 = vmax.bf16 %v370, %v383
      %v386 = vmax.bf16 %v385, %v381
      %v387 = vld [vmem:[#allocation2 + $0x40] sm:$0xf]
      %v388 = vld [vmem:[#allocation2 + $0x40] sm:$0xf0]
      %v390 = vshrl.u32 %v388, 16
      %v392 = vrot.slane %v390, 3
      %v393 = vshll.u32 %v388, 16
      %v395 = vrot.slane %v393, 4
      %v396 = vor.u32 %v392, %v395
      %v398 = vsel %vm261, 0, %v396
      %v400 = vrot.slane %v388, 4
      %v402 = vmax.bf16 %v387, %v400
      %v403 = vmax.bf16 %v402, %v398
      %v404 = vld [vmem:[#allocation2 + $0x48] sm:$0xf]
      %v405 = vld [vmem:[#allocation2 + $0x48] sm:$0xf0]
      %v407 = vshrl.u32 %v405, 16
      %v409 = vrot.slane %v407, 3
      %v410 = vshll.u32 %v405, 16
      %v412 = vrot.slane %v410, 4
      %v413 = vor.u32 %v409, %v412
      %v415 = vsel %vm261, 0, %v413
      %v417 = vrot.slane %v405, 4
      %v419 = vmax.bf16 %v404, %v417
      %v420 = vmax.bf16 %v419, %v415
      %v421 = vld [vmem:[#allocation2 + $0x50] sm:$0xf]
      %v422 = vld [vmem:[#allocation2 + $0x50] sm:$0xf0]
      %v424 = vshrl.u32 %v422, 16
      %v426 = vrot.slane %v424, 3
      %v427 = vshll.u32 %v422, 16
      %v429 = vrot.slane %v427, 4
      %v430 = vor.u32 %v426, %v429
      %v432 = vsel %vm261, 0, %v430
      %v434 = vrot.slane %v422, 4
      %v436 = vmax.bf16 %v421, %v434
      %v437 = vmax.bf16 %v436, %v432
      %v438 = vld [vmem:[#allocation2 + $0x58] sm:$0xf]
      %v439 = vld [vmem:[#allocation2 + $0x58] sm:$0xf0]
      %v441 = vshrl.u32 %v439, 16
      %v443 = vrot.slane %v441, 3
      %v444 = vshll.u32 %v439, 16
      %v446 = vrot.slane %v444, 4
      %v447 = vor.u32 %v443, %v446
      %v449 = vsel %vm261, 0, %v447
      %v451 = vrot.slane %v439, 4
      %v453 = vmax.bf16 %v438, %v451
      %v454 = vmax.bf16 %v453, %v449
      %v455 = vld [vmem:[#allocation2 + $0x60] sm:$0xf]
      %v456 = vld [vmem:[#allocation2 + $0x60] sm:$0xf0]
      %v458 = vshrl.u32 %v456, 16
      %v460 = vrot.slane %v458, 3
      %v461 = vshll.u32 %v456, 16
      %v463 = vrot.slane %v461, 4
      %v464 = vor.u32 %v460, %v463
      %v466 = vsel %vm261, 0, %v464
      %v468 = vrot.slane %v456, 4
      %v470 = vmax.bf16 %v455, %v468
      %v471 = vmax.bf16 %v470, %v466
      %v472 = vld [vmem:[#allocation2 + $0x68] sm:$0xf]
      %v473 = vld [vmem:[#allocation2 + $0x68] sm:$0xf0]
      %v475 = vshrl.u32 %v473, 16
      %v477 = vrot.slane %v475, 3
      %v478 = vshll.u32 %v473, 16
      %v480 = vrot.slane %v478, 4
      %v481 = vor.u32 %v477, %v480
      %v483 = vsel %vm261, 0, %v481
      %v485 = vrot.slane %v473, 4
      %v487 = vmax.bf16 %v472, %v485
      %v488 = vmax.bf16 %v487, %v483
      %v489 = vld [vmem:[#allocation2 + $0x70] sm:$0xf]
      %v490 = vld [vmem:[#allocation2 + $0x70] sm:$0xf0]
      %v492 = vshrl.u32 %v490, 16
      %v494 = vrot.slane %v492, 3
      %v495 = vshll.u32 %v490, 16
      %v497 = vrot.slane %v495, 4
      %v498 = vor.u32 %v494, %v497
      %v500 = vsel %vm261, 0, %v498
      %v502 = vrot.slane %v490, 4
      %v504 = vmax.bf16 %v489, %v502
      %v505 = vmax.bf16 %v504, %v500
      %v506 = vld [vmem:[#allocation2 + $0x78] sm:$0xf]
      %v507 = vld [vmem:[#allocation2 + $0x78] sm:$0xf0]
      %v509 = vshrl.u32 %v507, 16
      %v511 = vrot.slane %v509, 3
      %v512 = vshll.u32 %v507, 16
      %v514 = vrot.slane %v512, 4
      %v515 = vor.u32 %v511, %v514
      %v517 = vsel %vm261, 0, %v515
      %v519 = vrot.slane %v507, 4
      %v521 = vmax.bf16 %v506, %v519
      %v522 = vmax.bf16 %v521, %v517
      %v523 = vld [vmem:[#allocation2 + $0x80] sm:$0xf]
      %v524 = vld [vmem:[#allocation2 + $0x80] sm:$0xf0]
      %v526 = vshrl.u32 %v524, 16
      %v528 = vrot.slane %v526, 3
      %v529 = vshll.u32 %v524, 16
      %v531 = vrot.slane %v529, 4
      %v532 = vor.u32 %v528, %v531
      %v534 = vsel %vm261, 0, %v532
      %v536 = vrot.slane %v524, 4
      %v538 = vmax.bf16 %v523, %v536
      %v539 = vmax.bf16 %v538, %v534
      %v540 = vmax.bf16 %v267, %v284
      %v541 = vmax.bf16 %v540, %v301
      %v542 = vunpack.c.l.bf16 %v541
      %543 = vst [vmem:[%s68] sm:$0xff] %v542
      %v544 = vmax.bf16 %v301, %v318
      %v545 = vmax.bf16 %v544, %v335
      %v546 = vunpack.c.l.bf16 %v545
      %s547 = scalar_lea.vmem %s68, 8
      %548 = vst [vmem:[%s547] sm:$0xff] %v546
      %v549 = vmax.bf16 %v335, %v352
      %v550 = vmax.bf16 %v549, %v369
      %v551 = vunpack.c.l.bf16 %v550
      %s552 = scalar_lea.vmem %s68, 16
      %553 = vst [vmem:[%s552] sm:$0xff] %v551
      %v554 = vmax.bf16 %v369, %v386
      %v555 = vmax.bf16 %v554, %v403
      %v556 = vunpack.c.l.bf16 %v555
      %s557 = scalar_lea.vmem %s68, 24
      %558 = vst [vmem:[%s557] sm:$0xff] %v556
      %v559 = vmax.bf16 %v403, %v420
      %v560 = vmax.bf16 %v559, %v437
      %v561 = vunpack.c.l.bf16 %v560
      %s562 = scalar_lea.vmem %s68, 32
      %563 = vst [vmem:[%s562] sm:$0xff] %v561
      %v564 = vmax.bf16 %v437, %v454
      %v565 = vmax.bf16 %v564, %v471
      %v566 = vunpack.c.l.bf16 %v565
      %s567 = scalar_lea.vmem %s68, 40
      %568 = vst [vmem:[%s567] sm:$0xff] %v566
      %v569 = vmax.bf16 %v471, %v488
      %v570 = vmax.bf16 %v569, %v505
      %v571 = vunpack.c.l.bf16 %v570
      %s572 = scalar_lea.vmem %s68, 48
      %573 = vst [vmem:[%s572] sm:$0xff] %v571
      %v574 = vmax.bf16 %v505, %v522
      %v575 = vmax.bf16 %v574, %v539
      %v576 = vunpack.c.l.bf16 %v575
      %s577 = scalar_lea.vmem %s68, 56
      %578 = vst [vmem:[%s577] sm:$0xff] %v576
      %s579 = smul.u32 8, %s14
      %p580 = scmp.lt.s32.totalorder %s13, 1
      %s581 = scalar_select %p580, %s13, 1
      %p582 = scmp.lt.s32.totalorder %s579, 7
      %s583 = scalar_select %p582, %s579, 7
      %s584 = smul.addr %s581, 8
      %s585 = sadd.s32 %s583, %s584
      %s586 = smul.addr %s585, 8
      %s587 = scalar_lea.vmem %s1, %s586
      // Predicated region
      $region89: #{encoder_forward.3} parent=11 // pred_check
        %p588 = pneg %p34
      $region90: #{encoder_forward.3} parent=11 // pred_check_branch
        %590 = sbr.rel (%p588) target = $region92
      $region91: #{encoder_forward.3} parent=11 // pred_region
        %s591 = smul.u32 8, %s14
      $region92: #{encoder_forward.3} parent=11 // pred_fallthru
        _
    $region12: #{encoder_forward.3} parent=5 // pred_fallthru
      _
    %p592 = scmp.le.s32.totalorder 1, %s7
    // Predicated region
    $region93: #{encoder_forward.3} parent=5 // pred_check
      %p593 = pneg %p592
    $region94: #{encoder_forward.3} parent=5 // pred_check_branch
      %595 = sbr.rel (%p593) target = $region96
    $region95: #{encoder_forward.3} parent=5 // pred_region
      %s596 = ssub.s32 %s7, 1
      // Predicated region
      $region97: #{encoder_forward.3} parent=95 // pred_check
        %p597 = pneg %p40
      $region98: #{encoder_forward.3} parent=95 // pred_check_branch
        %599 = sbr.rel (%p597) target = $region100
      $region99: #{encoder_forward.3} parent=95 // pred_region
        %s600 = smul.u32 8, %s16
        %p601 = scmp.lt.s32.totalorder %s15, 1
        %s602 = scalar_select %p601, %s15, 1
        %p603 = scmp.lt.s32.totalorder %s600, 7
        %s604 = scalar_select %p603, %s600, 7
        %s605 = smul.addr %s602, 8
        %s606 = sadd.s32 %s604, %s605
        %s607 = smul.addr %s606, 8
        %s608 = scalar_lea.vmem %s1, %s607
      $region100: #{encoder_forward.3} parent=95 // pred_fallthru
        _
    $region96: #{encoder_forward.3} parent=5 // pred_fallthru
      _
  $region6: #{encoder_forward.3} parent=0 // loop_footer
    %s11 = sadd.s32 1, %s7
  $region7: #{encoder_forward.3} parent=0 // loop_footer_branch
    %6 = sbr.rel target = $region3
  $region8: #{encoder_forward.3} parent=0 // loop_exit
    _
  %609 = vsyncmov [#allocation3]
  %s610 = vpop.sfrf %609
  %p611 = scmp.eq.s32.totalorder %s610, 0
  %p612 = pneg %p611
  %614 = shalt.err (%p612)

// kernel: encoder_forward.2
$region0: #{encoder_forward.2}
  #allocation0 [shape = 'u32[]', space=smem, size = 0x4, offset = 0x4, fixed_abs, tag = 'smem constant byte address 0x4 - core index']
  #allocation1 [shape = 'u32[144,128]{1,0:T(1,128)}', space=vmem, size = 0x12000, scoped, tag = 'internal scratch']
  %s0 = inlined_call_operand.vmem [shape: bf16[512,147], index: 0, kind: input, shape index: {}]
  %s1 = inlined_call_operand.vmem [shape: bf16[147,128], index: 1, kind: input, shape index: {}]
  %s2 = inlined_call_operand.vmem [shape: f32[1,128], index: 2, kind: input, shape index: {}]
  %s3 = inlined_call_operand.vmem [shape: bf16[512,128], index: 3, kind: output, shape index: {}]
  %s4 = sld [smem:[#allocation0]]
  $region22: #{encoder_forward.2} parent=0
    _
  %s6 = ssub.s32 1, %s4
  %s7 = scalar_select 0, %s6, %s4
  // Predicated region
  $region2: #{encoder_forward.2} parent=0 // pred_check
    _
  $region3: #{encoder_forward.2} parent=0 // pred_check_branch
    %9 = sbr.rel (0) target = $region5
  $region4: #{encoder_forward.2} parent=0 // pred_region
    _
  $region5: #{encoder_forward.2} parent=0 // pred_fallthru
    _
  // Predicated region
  $region6: #{encoder_forward.2} parent=0 // pred_check
    _
  $region7: #{encoder_forward.2} parent=0 // pred_check_branch
    %11 = sbr.rel (0) target = $region9
  $region8: #{encoder_forward.2} parent=0 // pred_region
    _
  $region9: #{encoder_forward.2} parent=0 // pred_fallthru
    _
  // Predicated region
  $region10: #{encoder_forward.2} parent=0 // pred_check
    _
  $region11: #{encoder_forward.2} parent=0 // pred_check_branch
    %13 = sbr.rel (0) target = $region13
  $region12: #{encoder_forward.2} parent=0 // pred_region
    _
  $region13: #{encoder_forward.2} parent=0 // pred_fallthru
    _
  %v15 = vld [vmem:[%s0] sm:$0xff]
  %v16 = vld [vmem:[%s0 + $0x8] sm:$0xff]
  %v17 = vld [vmem:[%s0 + $0x10] sm:$0xff]
  %v18 = vld [vmem:[%s0 + $0x18] sm:$0xff]
  %v19 = vld [vmem:[%s0 + $0x20] sm:$0xff]
  %v20 = vld [vmem:[%s0 + $0x28] sm:$0xff]
  %v21 = vld [vmem:[%s0 + $0x30] sm:$0xff]
  %v22 = vld [vmem:[%s0 + $0x38] sm:$0xff]
  %v23 = vld [vmem:[%s0 + $0x40] sm:$0xff]
  %v24 = vld [vmem:[%s0 + $0x48] sm:$0xff]
  %v25 = vld [vmem:[%s0 + $0x50] sm:$0xff]
  %v26 = vld [vmem:[%s0 + $0x58] sm:$0xff]
  %v27 = vld [vmem:[%s0 + $0x60] sm:$0xff]
  %v28 = vld [vmem:[%s0 + $0x68] sm:$0xff]
  %v29 = vld [vmem:[%s0 + $0x70] sm:$0xff]
  %v30 = vld [vmem:[%s0 + $0x78] sm:$0xff]
  %v31 = vld [vmem:[%s0 + $0x80] sm:$0xff]
  %v32 = vld [vmem:[%s0 + $0x88] sm:$0xff]
  %v33 = vld [vmem:[%s0 + $0x90] sm:$0xff]
  %v34 = vld [vmem:[%s0 + $0x98] sm:$0xff]
  %v35 = vld [vmem:[%s0 + $0xa0] sm:$0xff]
  %v36 = vld [vmem:[%s0 + $0xa8] sm:$0xff]
  %v37 = vld [vmem:[%s0 + $0xb0] sm:$0xff]
  %v38 = vld [vmem:[%s0 + $0xb8] sm:$0xff]
  %v39 = vld [vmem:[%s0 + $0xc0] sm:$0xff]
  %v40 = vld [vmem:[%s0 + $0xc8] sm:$0xff]
  %v41 = vld [vmem:[%s0 + $0xd0] sm:$0xff]
  %v42 = vld [vmem:[%s0 + $0xd8] sm:$0xff]
  %v43 = vld [vmem:[%s0 + $0xe0] sm:$0xff]
  %v44 = vld [vmem:[%s0 + $0xe8] sm:$0xff]
  %v45 = vld [vmem:[%s0 + $0xf0] sm:$0xff]
  %v46 = vld [vmem:[%s0 + $0xf8] sm:$0xff]
  %v47 = vld [vmem:[%s0 + $0x100] sm:$0xff]
  %v48 = vld [vmem:[%s0 + $0x108] sm:$0xff]
  %v49 = vld [vmem:[%s0 + $0x110] sm:$0xff]
  %v50 = vld [vmem:[%s0 + $0x118] sm:$0xff]
  %v51 = vld [vmem:[%s0 + $0x120] sm:$0xff]
  %v52 = vld [vmem:[%s0 + $0x128] sm:$0xff]
  %v53 = vld [vmem:[%s0 + $0x130] sm:$0xff]
  %v54 = vld [vmem:[%s0 + $0x138] sm:$0xff]
  %v55 = vld [vmem:[%s0 + $0x140] sm:$0xff]
  %v56 = vld [vmem:[%s0 + $0x148] sm:$0xff]
  %v57 = vld [vmem:[%s0 + $0x150] sm:$0xff]
  %v58 = vld [vmem:[%s0 + $0x158] sm:$0xff]
  %v59 = vld [vmem:[%s0 + $0x160] sm:$0xff]
  %v60 = vld [vmem:[%s0 + $0x168] sm:$0xff]
  %v61 = vld [vmem:[%s0 + $0x170] sm:$0xff]
  %v62 = vld [vmem:[%s0 + $0x178] sm:$0xff]
  %v63 = vld [vmem:[%s0 + $0x180] sm:$0xff]
  %v64 = vld [vmem:[%s0 + $0x188] sm:$0xff]
  %v65 = vld [vmem:[%s0 + $0x190] sm:$0xff]
  %v66 = vld [vmem:[%s0 + $0x198] sm:$0xff]
  %v67 = vld [vmem:[%s0 + $0x1a0] sm:$0xff]
  %v68 = vld [vmem:[%s0 + $0x1a8] sm:$0xff]
  %v69 = vld [vmem:[%s0 + $0x1b0] sm:$0xff]
  %v70 = vld [vmem:[%s0 + $0x1b8] sm:$0xff]
  %v71 = vld [vmem:[%s0 + $0x1c0] sm:$0xff]
  %v72 = vld [vmem:[%s0 + $0x1c8] sm:$0xff]
  %v73 = vld [vmem:[%s0 + $0x1d0] sm:$0xff]
  %v74 = vld [vmem:[%s0 + $0x1d8] sm:$0xff]
  %v75 = vld [vmem:[%s0 + $0x1e0] sm:$0xff]
  %v76 = vld [vmem:[%s0 + $0x1e8] sm:$0xff]
  %v77 = vld [vmem:[%s0 + $0x1f0] sm:$0xff]
  %v78 = vld [vmem:[%s0 + $0x1f8] sm:$0xff]
  %v79 = vld [vmem:[%s1] sm:$0xf]
  %v80 = vld [vmem:[%s1 + $0x4] sm:$0xf]
  %v81 = vld [vmem:[%s1 + $0x8] sm:$0xf]
  %v82 = vld [vmem:[%s1 + $0xc] sm:$0xf]
  %v83 = vld [vmem:[%s1 + $0x10] sm:$0xf]
  %v84 = vld [vmem:[%s1 + $0x14] sm:$0xf]
  %v85 = vld [vmem:[%s1 + $0x18] sm:$0xf]
  %v86 = vld [vmem:[%s1 + $0x1c] sm:$0xf]
  %v87 = vld [vmem:[%s1 + $0x20] sm:$0xf]
  %v88 = vld [vmem:[%s1 + $0x24] sm:$0xf]
  %v89 = vld [vmem:[%s1 + $0x28] sm:$0xf]
  %v90 = vld [vmem:[%s1 + $0x2c] sm:$0xf]
  %v91 = vld [vmem:[%s1 + $0x30] sm:$0xf]
  %v92 = vld [vmem:[%s1 + $0x34] sm:$0xf]
  %v93 = vld [vmem:[%s1 + $0x38] sm:$0xf]
  %v94 = vld [vmem:[%s1 + $0x3c] sm:$0xf]
  %v95 = vld [vmem:[%s1 + $0x40] sm:$0xf]
  %v96 = vld [vmem:[%s1 + $0x44] sm:$0xf]
  %v97 = vld [vmem:[%s1 + $0x48] sm:$0x3]
  %v98 = vld [vmem:[%s2] sm:$0x1]
  %v100 = vlaneseq
  %v101 = vshrl.u32 %v100, 7
  %v102 = vsub.s32 0, %v101
  %v103 = vrot.slane %v98, %v102
  %v169 = vunpack.c.l.b16 %v15
  %v170 = vunpack.c.h.b16 %v15
  %v171 = vunpack.c.l.b16 %v16
  %v172 = vunpack.c.h.b16 %v16
  %v173 = vunpack.c.l.b16 %v17
  %v174 = vunpack.c.h.b16 %v17
  %v175 = vunpack.c.l.b16 %v18
  %v176 = vunpack.c.h.b16 %v18
  %v177 = vunpack.c.l.b16 %v19
  %v178 = vunpack.c.h.b16 %v19
  %v179 = vunpack.c.l.b16 %v20
  %v180 = vunpack.c.h.b16 %v20
  %v181 = vunpack.c.l.b16 %v21
  %v182 = vunpack.c.h.b16 %v21
  %v183 = vunpack.c.l.b16 %v22
  %v184 = vunpack.c.h.b16 %v22
  %v185 = vunpack.c.l.b16 %v23
  %v186 = vunpack.c.h.b16 %v23
  %v187 = vunpack.c.l.b16 %v24
  %v188 = vunpack.c.h.b16 %v24
  %v189 = vunpack.c.l.b16 %v25
  %v190 = vunpack.c.h.b16 %v25
  %v191 = vunpack.c.l.b16 %v26
  %v192 = vunpack.c.h.b16 %v26
  %v193 = vunpack.c.l.b16 %v27
  %v194 = vunpack.c.h.b16 %v27
  %v195 = vunpack.c.l.b16 %v28
  %v196 = vunpack.c.h.b16 %v28
  %v197 = vunpack.c.l.b16 %v29
  %v198 = vunpack.c.h.b16 %v29
  %v199 = vunpack.c.l.b16 %v30
  %v200 = vunpack.c.h.b16 %v30
  %v201 = vunpack.c.l.b16 %v31
  %v202 = vunpack.c.h.b16 %v31
  %v203 = vunpack.c.l.b16 %v32
  %v204 = vunpack.c.h.b16 %v32
  %v205 = vunpack.c.l.b16 %v33
  %v206 = vunpack.c.h.b16 %v33
  %v207 = vunpack.c.l.b16 %v34
  %v208 = vunpack.c.h.b16 %v34
  %v209 = vunpack.c.l.b16 %v35
  %v210 = vunpack.c.h.b16 %v35
  %v211 = vunpack.c.l.b16 %v36
  %v212 = vunpack.c.h.b16 %v36
  %v213 = vunpack.c.l.b16 %v37
  %v214 = vunpack.c.h.b16 %v37
  %v215 = vunpack.c.l.b16 %v38
  %v216 = vunpack.c.h.b16 %v38
  %v217 = vunpack.c.l.b16 %v39
  %v218 = vunpack.c.h.b16 %v39
  %v219 = vunpack.c.l.b16 %v40
  %v220 = vunpack.c.h.b16 %v40
  %v221 = vunpack.c.l.b16 %v41
  %v222 = vunpack.c.h.b16 %v41
  %v223 = vunpack.c.l.b16 %v42
  %v224 = vunpack.c.h.b16 %v42
  %v225 = vunpack.c.l.b16 %v43
  %v226 = vunpack.c.h.b16 %v43
  %v227 = vunpack.c.l.b16 %v44
  %v228 = vunpack.c.h.b16 %v44
  %v229 = vunpack.c.l.b16 %v45
  %v230 = vunpack.c.h.b16 %v45
  %v231 = vunpack.c.l.b16 %v46
  %v232 = vunpack.c.h.b16 %v46
  %v233 = vunpack.c.l.b16 %v47
  %v234 = vunpack.c.h.b16 %v47
  %v235 = vunpack.c.l.b16 %v48
  %v236 = vunpack.c.h.b16 %v48
  %v237 = vunpack.c.l.b16 %v49
  %v238 = vunpack.c.h.b16 %v49
  %v239 = vunpack.c.l.b16 %v50
  %v240 = vunpack.c.h.b16 %v50
  %v241 = vunpack.c.l.b16 %v51
  %v242 = vunpack.c.h.b16 %v51
  %v243 = vunpack.c.l.b16 %v52
  %v244 = vunpack.c.h.b16 %v52
  %v245 = vunpack.c.l.b16 %v53
  %v246 = vunpack.c.h.b16 %v53
  %v247 = vunpack.c.l.b16 %v54
  %v248 = vunpack.c.h.b16 %v54
  %v249 = vunpack.c.l.b16 %v55
  %v250 = vunpack.c.h.b16 %v55
  %v251 = vunpack.c.l.b16 %v56
  %v252 = vunpack.c.h.b16 %v56
  %v253 = vunpack.c.l.b16 %v57
  %v254 = vunpack.c.h.b16 %v57
  %v255 = vunpack.c.l.b16 %v58
  %v256 = vunpack.c.h.b16 %v58
  %v257 = vunpack.c.l.b16 %v59
  %v258 = vunpack.c.h.b16 %v59
  %v259 = vunpack.c.l.b16 %v60
  %v260 = vunpack.c.h.b16 %v60
  %v261 = vunpack.c.l.b16 %v61
  %v262 = vunpack.c.h.b16 %v61
  %v263 = vunpack.c.l.b16 %v62
  %v264 = vunpack.c.h.b16 %v62
  %v265 = vunpack.c.l.b16 %v63
  %v266 = vunpack.c.h.b16 %v63
  %v267 = vunpack.c.l.b16 %v64
  %v268 = vunpack.c.h.b16 %v64
  %v269 = vunpack.c.l.b16 %v65
  %v270 = vunpack.c.h.b16 %v65
  %v271 = vunpack.c.l.b16 %v66
  %v272 = vunpack.c.h.b16 %v66
  %v273 = vunpack.c.l.b16 %v67
  %v274 = vunpack.c.h.b16 %v67
  %v275 = vunpack.c.l.b16 %v68
  %v276 = vunpack.c.h.b16 %v68
  %v277 = vunpack.c.l.b16 %v69
  %v278 = vunpack.c.h.b16 %v69
  %v279 = vunpack.c.l.b16 %v70
  %v280 = vunpack.c.h.b16 %v70
  %v281 = vunpack.c.l.b16 %v71
  %v282 = vunpack.c.h.b16 %v71
  %v283 = vunpack.c.l.b16 %v72
  %v284 = vunpack.c.h.b16 %v72
  %v285 = vunpack.c.l.b16 %v73
  %v286 = vunpack.c.h.b16 %v73
  %v287 = vunpack.c.l.b16 %v74
  %v288 = vunpack.c.h.b16 %v74
  %v289 = vunpack.c.l.b16 %v75
  %v290 = vunpack.c.h.b16 %v75
  %v291 = vunpack.c.l.b16 %v76
  %v292 = vunpack.c.h.b16 %v76
  %v293 = vunpack.c.l.b16 %v77
  %v294 = vunpack.c.h.b16 %v77
  %v295 = vunpack.c.l.b16 %v78
  %v296 = vunpack.c.h.b16 %v78
  %v297 = vpack.c.b16 %v171, %v169
  %v298 = vpack.c.b16 %v172, %v170
  %v299 = vpack.c.b16 %v175, %v173
  %v300 = vpack.c.b16 %v176, %v174
  %v301 = vpack.c.b16 %v179, %v177
  %v302 = vpack.c.b16 %v180, %v178
  %v303 = vpack.c.b16 %v183, %v181
  %v304 = vpack.c.b16 %v184, %v182
  %v305 = vpack.c.b16 %v187, %v185
  %v306 = vpack.c.b16 %v188, %v186
  %v307 = vpack.c.b16 %v191, %v189
  %v308 = vpack.c.b16 %v192, %v190
  %v309 = vpack.c.b16 %v195, %v193
  %v310 = vpack.c.b16 %v196, %v194
  %v311 = vpack.c.b16 %v199, %v197
  %v312 = vpack.c.b16 %v200, %v198
  %v313 = vpack.c.b16 %v203, %v201
  %v314 = vpack.c.b16 %v204, %v202
  %v315 = vpack.c.b16 %v207, %v205
  %v316 = vpack.c.b16 %v208, %v206
  %v317 = vpack.c.b16 %v211, %v209
  %v318 = vpack.c.b16 %v212, %v210
  %v319 = vpack.c.b16 %v215, %v213
  %v320 = vpack.c.b16 %v216, %v214
  %v321 = vpack.c.b16 %v219, %v217
  %v322 = vpack.c.b16 %v220, %v218
  %v323 = vpack.c.b16 %v223, %v221
  %v324 = vpack.c.b16 %v224, %v222
  %v325 = vpack.c.b16 %v227, %v225
  %v326 = vpack.c.b16 %v228, %v226
  %v327 = vpack.c.b16 %v231, %v229
  %v328 = vpack.c.b16 %v232, %v230
  %v329 = vpack.c.b16 %v235, %v233
  %v330 = vpack.c.b16 %v236, %v234
  %v331 = vpack.c.b16 %v239, %v237
  %v332 = vpack.c.b16 %v240, %v238
  %v333 = vpack.c.b16 %v243, %v241
  %v334 = vpack.c.b16 %v244, %v242
  %v335 = vpack.c.b16 %v247, %v245
  %v336 = vpack.c.b16 %v248, %v246
  %v337 = vpack.c.b16 %v251, %v249
  %v338 = vpack.c.b16 %v252, %v250
  %v339 = vpack.c.b16 %v255, %v253
  %v340 = vpack.c.b16 %v256, %v254
  %v341 = vpack.c.b16 %v259, %v257
  %v342 = vpack.c.b16 %v260, %v258
  %v343 = vpack.c.b16 %v263, %v261
  %v344 = vpack.c.b16 %v264, %v262
  %v345 = vpack.c.b16 %v267, %v265
  %v346 = vpack.c.b16 %v268, %v266
  %v347 = vpack.c.b16 %v271, %v269
  %v348 = vpack.c.b16 %v272, %v270
  %v349 = vpack.c.b16 %v275, %v273
  %v350 = vpack.c.b16 %v276, %v274
  %v351 = vpack.c.b16 %v279, %v277
  %v352 = vpack.c.b16 %v280, %v278
  %v353 = vpack.c.b16 %v283, %v281
  %v354 = vpack.c.b16 %v284, %v282
  %v355 = vpack.c.b16 %v287, %v285
  %v356 = vpack.c.b16 %v288, %v286
  %v357 = vpack.c.b16 %v291, %v289
  %v358 = vpack.c.b16 %v292, %v290
  %v359 = vpack.c.b16 %v295, %v293
  %v360 = vpack.c.b16 %v296, %v294
  %v412 = vunpack.c.l.b16 %v79
  %v413 = vunpack.c.l.b16 %v80
  %v414 = vunpack.c.l.b16 %v81
  %v415 = vunpack.c.l.b16 %v82
  %v416 = vunpack.c.l.b16 %v83
  %v417 = vunpack.c.l.b16 %v84
  %v418 = vunpack.c.l.b16 %v85
  %v419 = vunpack.c.l.b16 %v86
  %v420 = vunpack.c.l.b16 %v87
  %v421 = vunpack.c.l.b16 %v88
  %v422 = vunpack.c.l.b16 %v89
  %v423 = vunpack.c.l.b16 %v90
  %v424 = vunpack.c.l.b16 %v91
  %v425 = vunpack.c.l.b16 %v92
  %v426 = vunpack.c.l.b16 %v93
  %v427 = vunpack.c.l.b16 %v94
  %v428 = vunpack.c.l.b16 %v95
  %v429 = vunpack.c.l.b16 %v96
  %v430 = vunpack.c.l.b16 %v97
  %v431 = vpack.c.b16 %v413, %v412
  %v432 = vpack.c.b16 %v415, %v414
  %v433 = vpack.c.b16 %v417, %v416
  %v434 = vpack.c.b16 %v419, %v418
  %v435 = vpack.c.b16 %v421, %v420
  %v436 = vpack.c.b16 %v423, %v422
  %v437 = vpack.c.b16 %v425, %v424
  %v438 = vpack.c.b16 %v427, %v426
  %v439 = vpack.c.b16 %v429, %v428
  %v440 = vpack.c.b16 %v430, %v430
  %vm450 = vcmask 154624
  %v452 = vsel %vm450, %v298, 0
  %v455 = vsel %vm450, %v300, 0
  %v458 = vsel %vm450, %v302, 0
  %v461 = vsel %vm450, %v304, 0
  %v464 = vsel %vm450, %v306, 0
  %v467 = vsel %vm450, %v308, 0
  %v470 = vsel %vm450, %v310, 0
  %v473 = vsel %vm450, %v312, 0
  %v476 = vsel %vm450, %v314, 0
  %v479 = vsel %vm450, %v316, 0
  %v482 = vsel %vm450, %v318, 0
  %v485 = vsel %vm450, %v320, 0
  %v488 = vsel %vm450, %v322, 0
  %v491 = vsel %vm450, %v324, 0
  %v494 = vsel %vm450, %v326, 0
  %v497 = vsel %vm450, %v328, 0
  %v500 = vsel %vm450, %v330, 0
  %v503 = vsel %vm450, %v332, 0
  %v506 = vsel %vm450, %v334, 0
  %v509 = vsel %vm450, %v336, 0
  %v512 = vsel %vm450, %v338, 0
  %v515 = vsel %vm450, %v340, 0
  %v518 = vsel %vm450, %v342, 0
  %v521 = vsel %vm450, %v344, 0
  %v524 = vsel %vm450, %v346, 0
  %v527 = vsel %vm450, %v348, 0
  %v530 = vsel %vm450, %v350, 0
  %v533 = vsel %vm450, %v352, 0
  %v536 = vsel %vm450, %v354, 0
  %v539 = vsel %vm450, %v356, 0
  %v542 = vsel %vm450, %v358, 0
  %v545 = vsel %vm450, %v360, 0
  %vm547 = vcmask 1040384
  %vm548 = vcmask 1041408
  %v549 = vsel %vm547, 4294967295, 65535
  %v550 = vsel %vm548, %v549, 0
  %v552 = vand.u32 %v440, %v550
  %554 = vmatprep.subr.bf16.mxu0 0
  %555 = vmatpush1.bf16.msra.mxu0 %v431
  %556 = vmatprep.subr.bf16.mxu0 0
  %557 = vmatpush1.bf16.msra.mxu0 %v432
  %558 = vmatprep.subr.bf16.mxu0 0
  %559 = vmatpush1.bf16.msra.mxu0 %v433
  %560 = vmatprep.subr.bf16.mxu0 0
  %561 = vmatpush1.bf16.msra.mxu0 %v434
  %562 = vmatprep.subr.bf16.mxu0 0
  %563 = vmatpush1.bf16.msra.mxu0 %v435
  %564 = vmatprep.subr.bf16.mxu0 0
  %565 = vmatpush1.bf16.msra.mxu0 %v436
  %566 = vmatprep.subr.bf16.mxu0 0
  %567 = vmatpush1.bf16.msra.mxu0 %v437
  %568 = vmatprep.subr.bf16.mxu0 0
  %569 = vmatpush1.bf16.msra.mxu0 %v438
  %570 = vmatprep.subr.bf16.mxu0 0
  %571 = vmatpush1.bf16.msra.mxu0 %v439
  %572 = vmatprep.subr.bf16.mxu0 0
  %573 = vmatpush1.bf16.msra.mxu0 %v552
  %574 = vmatprep.subr.bf16.mxu0 0
  %575 = vmatpush1.bf16.msra.mxu0 0
  %576 = vmatprep.subr.bf16.mxu0 0
  %577 = vmatpush1.bf16.msra.mxu0 0
  %578 = vmatprep.subr.bf16.mxu0 0
  %579 = vmatpush1.bf16.msra.mxu0 0
  %580 = vmatprep.subr.bf16.mxu0 0
  %581 = vmatpush1.bf16.msra.mxu0 0
  %582 = vmatprep.subr.bf16.mxu0 0
  %583 = vmatpush1.bf16.msra.mxu0 0
  %584 = vmatprep.subr.bf16.mxu0 0
  %585 = vmatpush1.bf16.msra.mxu0 0
  %586 = vmatprep.mubr.bf16.mxu0 %v452
  %587 = vmatmul.mubr.bf16.gmra.mrb[0].mxu0 %v297
  %v588 = vpop.f32.mrb[0].mxu0
  %v589 = vadd.f32 %v103, %v588
  %v590 = vpop.f32.mrb[0].mxu0
  %v591 = vpop.f32.mrb[0].mxu0
  %v592 = vadd.f32 %v103, %v591
  %v593 = vpop.f32.mrb[0].mxu0
  %594 = vmatprep.mubr.bf16.mxu0 %v455
  %595 = vmatmul.mubr.bf16.gmra.mrb[0].mxu0 %v299
  %v596 = vpop.f32.mrb[0].mxu0
  %v597 = vadd.f32 %v103, %v596
  %v598 = vpop.f32.mrb[0].mxu0
  %v599 = vpop.f32.mrb[0].mxu0
  %v600 = vadd.f32 %v103, %v599
  %v601 = vpop.f32.mrb[0].mxu0
  %602 = vmatprep.mubr.bf16.mxu0 %v458
  %603 = vmatmul.mubr.bf16.gmra.mrb[0].mxu0 %v301
  %v604 = vpop.f32.mrb[0].mxu0
  %v605 = vadd.f32 %v103, %v604
  %v606 = vpop.f32.mrb[0].mxu0
  %v607 = vpop.f32.mrb[0].mxu0
  %v608 = vadd.f32 %v103, %v607
  %v609 = vpop.f32.mrb[0].mxu0
  %610 = vmatprep.mubr.bf16.mxu0 %v461
  %611 = vmatmul.mubr.bf16.gmra.mrb[0].mxu0 %v303
  %v612 = vpop.f32.mrb[0].mxu0
  %v613 = vadd.f32 %v103, %v612
  %v614 = vpop.f32.mrb[0].mxu0
  %v615 = vpop.f32.mrb[0].mxu0
  %v616 = vadd.f32 %v103, %v615
  %v617 = vpop.f32.mrb[0].mxu0
  %618 = vmatprep.mubr.bf16.mxu0 %v464
  %619 = vmatmul.mubr.bf16.gmra.mrb[0].mxu0 %v305
  %v620 = vpop.f32.mrb[0].mxu0
  %v621 = vadd.f32 %v103, %v620
  %v622 = vpop.f32.mrb[0].mxu0
  %v623 = vpop.f32.mrb[0].mxu0
  %v624 = vadd.f32 %v103, %v623
  %v625 = vpop.f32.mrb[0].mxu0
  %626 = vmatprep.mubr.bf16.mxu0 %v467
  %627 = vmatmul.mubr.bf16.gmra.mrb[0].mxu0 %v307
  %v628 = vpop.f32.mrb[0].mxu0
  %v629 = vadd.f32 %v103, %v628
  %v630 = vpop.f32.mrb[0].mxu0
  %v631 = vpop.f32.mrb[0].mxu0
  %v632 = vadd.f32 %v103, %v631
  %v633 = vpop.f32.mrb[0].mxu0
  %634 = vmatprep.mubr.bf16.mxu0 %v470
  %635 = vmatmul.mubr.bf16.gmra.mrb[0].mxu0 %v309
  %v636 = vpop.f32.mrb[0].mxu0
  %v637 = vadd.f32 %v103, %v636
  %v638 = vpop.f32.mrb[0].mxu0
  %v639 = vpop.f32.mrb[0].mxu0
  %v640 = vadd.f32 %v103, %v639
  %v641 = vpop.f32.mrb[0].mxu0
  %642 = vmatprep.mubr.bf16.mxu0 %v473
  %643 = vmatmul.mubr.bf16.gmra.mrb[0].mxu0 %v311
  %v644 = vpop.f32.mrb[0].mxu0
  %v645 = vadd.f32 %v103, %v644
  %v646 = vpop.f32.mrb[0].mxu0
  %v647 = vpop.f32.mrb[0].mxu0
  %v648 = vadd.f32 %v103, %v647
  %v649 = vpop.f32.mrb[0].mxu0
  %650 = vmatprep.mubr.bf16.mxu0 %v476
  %651 = vmatmul.mubr.bf16.gmra.mrb[0].mxu0 %v313
  %v652 = vpop.f32.mrb[0].mxu0
  %v653 = vadd.f32 %v103, %v652
  %v654 = vpop.f32.mrb[0].mxu0
  %v655 = vpop.f32.mrb[0].mxu0
  %v656 = vadd.f32 %v103, %v655
  %v657 = vpop.f32.mrb[0].mxu0
  %658 = vmatprep.mubr.bf16.mxu0 %v479
  %659 = vmatmul.mubr.bf16.gmra.mrb[0].mxu0 %v315
  %v660 = vpop.f32.mrb[0].mxu0
  %v661 = vadd.f32 %v103, %v660
  %v662 = vpop.f32.mrb[0].mxu0
  %v663 = vpop.f32.mrb[0].mxu0
  %v664 = vadd.f32 %v103, %v663
  %v665 = vpop.f32.mrb[0].mxu0
  %666 = vmatprep.mubr.bf16.mxu0 %v482
  %667 = vmatmul.mubr.bf16.gmra.mrb[0].mxu0 %v317
  %v668 = vpop.f32.mrb[0].mxu0
  %v669 = vadd.f32 %v103, %v668
  %v670 = vpop.f32.mrb[0].mxu0
  %v671 = vpop.f32.mrb[0].mxu0
  %v672 = vadd.f32 %v103, %v671
  %v673 = vpop.f32.mrb[0].mxu0
  %674 = vmatprep.mubr.bf16.mxu0 %v485
  %675 = vmatmul.mubr.bf16.gmra.mrb[0].mxu0 %v319
  %v676 = vpop.f32.mrb[0].mxu0
  %v677 = vadd.f32 %v103, %v676
  %v678 = vpop.f32.mrb[0].mxu0
  %v679 = vpop.f32.mrb[0].mxu0
  %v680 = vadd.f32 %v103, %v679
  %v681 = vpop.f32.mrb[0].mxu0
  %682 = vmatprep.mubr.bf16.mxu0 %v488
  %683 = vmatmul.mubr.bf16.gmra.mrb[0].mxu0 %v321
  %v684 = vpop.f32.mrb[0].mxu0
  %v685 = vadd.f32 %v103, %v684
  %v686 = vpop.f32.mrb[0].mxu0
  %v687 = vpop.f32.mrb[0].mxu0
  %v688 = vadd.f32 %v103, %v687
  %v689 = vpop.f32.mrb[0].mxu0
  %690 = vmatprep.mubr.bf16.mxu0 %v491
  %691 = vmatmul.mubr.bf16.gmra.mrb[0].mxu0 %v323
  %v692 = vpop.f32.mrb[0].mxu0
  %v693 = vadd.f32 %v103, %v692
  %v694 = vpop.f32.mrb[0].mxu0
  %v695 = vpop.f32.mrb[0].mxu0
  %v696 = vadd.f32 %v103, %v695
  %v697 = vpop.f32.mrb[0].mxu0
  %698 = vmatprep.mubr.bf16.mxu0 %v494
  %699 = vmatmul.mubr.bf16.gmra.mrb[0].mxu0 %v325
  %v700 = vpop.f32.mrb[0].mxu0
  %v701 = vadd.f32 %v103, %v700
  %v702 = vpop.f32.mrb[0].mxu0
  %v703 = vpop.f32.mrb[0].mxu0
  %v704 = vadd.f32 %v103, %v703
  %v705 = vpop.f32.mrb[0].mxu0
  %706 = vmatprep.mubr.bf16.mxu0 %v497
  %707 = vmatmul.mubr.bf16.gmra.mrb[0].mxu0 %v327
  %v708 = vpop.f32.mrb[0].mxu0
  %v709 = vadd.f32 %v103, %v708
  %v710 = vpop.f32.mrb[0].mxu0
  %v711 = vpop.f32.mrb[0].mxu0
  %v712 = vadd.f32 %v103, %v711
  %v713 = vpop.f32.mrb[0].mxu0
  %714 = vmatprep.mubr.bf16.mxu0 %v500
  %715 = vmatmul.mubr.bf16.gmra.mrb[0].mxu0 %v329
  %v716 = vpop.f32.mrb[0].mxu0
  %v717 = vadd.f32 %v103, %v716
  %v718 = vpop.f32.mrb[0].mxu0
  %v719 = vpop.f32.mrb[0].mxu0
  %v720 = vadd.f32 %v103, %v719
  %v721 = vpop.f32.mrb[0].mxu0
  %722 = vmatprep.mubr.bf16.mxu0 %v503
  %723 = vmatmul.mubr.bf16.gmra.mrb[0].mxu0 %v331
  %v724 = vpop.f32.mrb[0].mxu0
  %v725 = vadd.f32 %v103, %v724
  %v726 = vpop.f32.mrb[0].mxu0
  %v727 = vpop.f32.mrb[0].mxu0
  %v728 = vadd.f32 %v103, %v727
  %v729 = vpop.f32.mrb[0].mxu0
  %730 = vmatprep.mubr.bf16.mxu0 %v506
  %731 = vmatmul.mubr.bf16.gmra.mrb[0].mxu0 %v333
  %v732 = vpop.f32.mrb[0].mxu0
  %v733 = vadd.f32 %v103, %v732
  %v734 = vpop.f32.mrb[0].mxu0
  %v735 = vpop.f32.mrb[0].mxu0
  %v736 = vadd.f32 %v103, %v735
  %v737 = vpop.f32.mrb[0].mxu0
  %738 = vmatprep.mubr.bf16.mxu0 %v509
  %739 = vmatmul.mubr.bf16.gmra.mrb[0].mxu0 %v335
  %v740 = vpop.f32.mrb[0].mxu0
  %v741 = vadd.f32 %v103, %v740
  %v742 = vpop.f32.mrb[0].mxu0
  %v743 = vpop.f32.mrb[0].mxu0
  %v744 = vadd.f32 %v103, %v743
  %v745 = vpop.f32.mrb[0].mxu0
  %746 = vmatprep.mubr.bf16.mxu0 %v512
  %747 = vmatmul.mubr.bf16.gmra.mrb[0].mxu0 %v337
  %v748 = vpop.f32.mrb[0].mxu0
  %v749 = vadd.f32 %v103, %v748
  %v750 = vpop.f32.mrb[0].mxu0
  %v751 = vpop.f32.mrb[0].mxu0
  %v752 = vadd.f32 %v103, %v751
  %v753 = vpop.f32.mrb[0].mxu0
  %754 = vmatprep.mubr.bf16.mxu0 %v515
  %755 = vmatmul.mubr.bf16.gmra.mrb[0].mxu0 %v339
  %v756 = vpop.f32.mrb[0].mxu0
  %v757 = vadd.f32 %v103, %v756
  %v758 = vpop.f32.mrb[0].mxu0
  %v759 = vpop.f32.mrb[0].mxu0
  %v760 = vadd.f32 %v103, %v759
  %v761 = vpop.f32.mrb[0].mxu0
  %762 = vmatprep.mubr.bf16.mxu0 %v518
  %763 = vmatmul.mubr.bf16.gmra.mrb[0].mxu0 %v341
  %v764 = vpop.f32.mrb[0].mxu0
  %v765 = vadd.f32 %v103, %v764
  %v766 = vpop.f32.mrb[0].mxu0
  %v767 = vpop.f32.mrb[0].mxu0
  %v768 = vadd.f32 %v103, %v767
  %v769 = vpop.f32.mrb[0].mxu0
  %770 = vmatprep.mubr.bf16.mxu0 %v521
  %771 = vmatmul.mubr.bf16.gmra.mrb[0].mxu0 %v343
  %v772 = vpop.f32.mrb[0].mxu0
  %v773 = vadd.f32 %v103, %v772
  %v774 = vpop.f32.mrb[0].mxu0
  %v775 = vpop.f32.mrb[0].mxu0
  %v776 = vadd.f32 %v103, %v775
  %v777 = vpop.f32.mrb[0].mxu0
  %778 = vmatprep.mubr.bf16.mxu0 %v524
  %779 = vmatmul.mubr.bf16.gmra.mrb[0].mxu0 %v345
  %v780 = vpop.f32.mrb[0].mxu0
  %v781 = vadd.f32 %v103, %v780
  %v782 = vpop.f32.mrb[0].mxu0
  %v783 = vpop.f32.mrb[0].mxu0
  %v784 = vadd.f32 %v103, %v783
  %v785 = vpop.f32.mrb[0].mxu0
  %786 = vmatprep.mubr.bf16.mxu0 %v527
  %787 = vmatmul.mubr.bf16.gmra.mrb[0].mxu0 %v347
  %v788 = vpop.f32.mrb[0].mxu0
  %v789 = vadd.f32 %v103, %v788
  %v790 = vpop.f32.mrb[0].mxu0
  %v791 = vpop.f32.mrb[0].mxu0
  %v792 = vadd.f32 %v103, %v791
  %v793 = vpop.f32.mrb[0].mxu0
  %794 = vmatprep.mubr.bf16.mxu0 %v530
  %795 = vmatmul.mubr.bf16.gmra.mrb[0].mxu0 %v349
  %v796 = vpop.f32.mrb[0].mxu0
  %v797 = vadd.f32 %v103, %v796
  %v798 = vpop.f32.mrb[0].mxu0
  %v799 = vpop.f32.mrb[0].mxu0
  %v800 = vadd.f32 %v103, %v799
  %v801 = vpop.f32.mrb[0].mxu0
  %802 = vmatprep.mubr.bf16.mxu0 %v533
  %803 = vmatmul.mubr.bf16.gmra.mrb[0].mxu0 %v351
  %v804 = vpop.f32.mrb[0].mxu0
  %v805 = vadd.f32 %v103, %v804
  %v806 = vpop.f32.mrb[0].mxu0
  %v807 = vpop.f32.mrb[0].mxu0
  %v808 = vadd.f32 %v103, %v807
  %v809 = vpop.f32.mrb[0].mxu0
  %810 = vmatprep.mubr.bf16.mxu0 %v536
  %811 = vmatmul.mubr.bf16.gmra.mrb[0].mxu0 %v353
  %v812 = vpop.f32.mrb[0].mxu0
  %v813 = vadd.f32 %v103, %v812
  %v814 = vpop.f32.mrb[0].mxu0
  %v815 = vpop.f32.mrb[0].mxu0
  %v816 = vadd.f32 %v103, %v815
  %v817 = vpop.f32.mrb[0].mxu0
  %818 = vmatprep.mubr.bf16.mxu0 %v539
  %819 = vmatmul.mubr.bf16.gmra.mrb[0].mxu0 %v355
  %v820 = vpop.f32.mrb[0].mxu0
  %v821 = vadd.f32 %v103, %v820
  %v822 = vpop.f32.mrb[0].mxu0
  %v823 = vpop.f32.mrb[0].mxu0
  %v824 = vadd.f32 %v103, %v823
  %v825 = vpop.f32.mrb[0].mxu0
  %826 = vmatprep.mubr.bf16.mxu0 %v542
  %827 = vmatmul.mubr.bf16.gmra.mrb[0].mxu0 %v357
  %v828 = vpop.f32.mrb[0].mxu0
  %v829 = vadd.f32 %v103, %v828
  %v830 = vpop.f32.mrb[0].mxu0
  %v831 = vpop.f32.mrb[0].mxu0
  %v832 = vadd.f32 %v103, %v831
  %v833 = vpop.f32.mrb[0].mxu0
  %834 = vmatprep.mubr.bf16.mxu0 %v545
  %835 = vmatmul.mubr.bf16.gmra.mrb[0].mxu0 %v359
  %v836 = vpop.f32.mrb[0].mxu0
  %v837 = vadd.f32 %v103, %v836
  %v838 = vpop.f32.mrb[0].mxu0
  %v839 = vpop.f32.mrb[0].mxu0
  %v840 = vadd.f32 %v103, %v839
  %v841 = vpop.f32.mrb[0].mxu0
  %842 = vdwg.mxu0
  %v843 = vmax.f32 %v589, 0.0
  %v844 = vmax.f32 %v592, 0.0
  %v845 = vmax.f32 %v597, 0.0
  %v846 = vmax.f32 %v600, 0.0
  %v847 = vmax.f32 %v605, 0.0
  %v848 = vmax.f32 %v608, 0.0
  %v849 = vmax.f32 %v613, 0.0
  %v850 = vmax.f32 %v616, 0.0
  %v851 = vmax.f32 %v621, 0.0
  %v852 = vmax.f32 %v624, 0.0
  %v853 = vmax.f32 %v629, 0.0
  %v854 = vmax.f32 %v632, 0.0
  %v855 = vmax.f32 %v637, 0.0
  %v856 = vmax.f32 %v640, 0.0
  %v857 = vmax.f32 %v645, 0.0
  %v858 = vmax.f32 %v648, 0.0
  %v859 = vmax.f32 %v653, 0.0
  %v860 = vmax.f32 %v656, 0.0
  %v861 = vmax.f32 %v661, 0.0
  %v862 = vmax.f32 %v664, 0.0
  %v863 = vmax.f32 %v669, 0.0
  %v864 = vmax.f32 %v672, 0.0
  %v865 = vmax.f32 %v677, 0.0
  %v866 = vmax.f32 %v680, 0.0
  %v867 = vmax.f32 %v685, 0.0
  %v868 = vmax.f32 %v688, 0.0
  %v869 = vmax.f32 %v693, 0.0
  %v870 = vmax.f32 %v696, 0.0
  %v871 = vmax.f32 %v701, 0.0
  %v872 = vmax.f32 %v704, 0.0
  %v873 = vmax.f32 %v709, 0.0
  %v874 = vmax.f32 %v712, 0.0
  %v875 = vmax.f32 %v717, 0.0
  %v876 = vmax.f32 %v720, 0.0
  %v877 = vmax.f32 %v725, 0.0
  %v878 = vmax.f32 %v728, 0.0
  %v879 = vmax.f32 %v733, 0.0
  %v880 = vmax.f32 %v736, 0.0
  %v881 = vmax.f32 %v741, 0.0
  %v882 = vmax.f32 %v744, 0.0
  %v883 = vmax.f32 %v749, 0.0
  %v884 = vmax.f32 %v752, 0.0
  %v885 = vmax.f32 %v757, 0.0
  %v886 = vmax.f32 %v760, 0.0
  %v887 = vmax.f32 %v765, 0.0
  %v888 = vmax.f32 %v768, 0.0
  %v889 = vmax.f32 %v773, 0.0
  %v890 = vmax.f32 %v776, 0.0
  %v891 = vmax.f32 %v781, 0.0
  %v892 = vmax.f32 %v784, 0.0
  %v893 = vmax.f32 %v789, 0.0
  %v894 = vmax.f32 %v792, 0.0
  %v895 = vmax.f32 %v797, 0.0
  %v896 = vmax.f32 %v800, 0.0
  %v897 = vmax.f32 %v805, 0.0
  %v898 = vmax.f32 %v808, 0.0
  %v899 = vmax.f32 %v813, 0.0
  %v900 = vmax.f32 %v816, 0.0
  %v901 = vmax.f32 %v821, 0.0
  %v902 = vmax.f32 %v824, 0.0
  %v903 = vmax.f32 %v829, 0.0
  %v904 = vmax.f32 %v832, 0.0
  %v905 = vmax.f32 %v837, 0.0
  %v906 = vmax.f32 %v840, 0.0
  %v907 = vpack.c.bf16 %v844, %v843
  %v908 = vpack.c.bf16 %v846, %v845
  %v909 = vpack.c.bf16 %v848, %v847
  %v910 = vpack.c.bf16 %v850, %v849
  %v911 = vpack.c.bf16 %v852, %v851
  %v912 = vpack.c.bf16 %v854, %v853
  %v913 = vpack.c.bf16 %v856, %v855
  %v914 = vpack.c.bf16 %v858, %v857
  %v915 = vpack.c.bf16 %v860, %v859
  %v916 = vpack.c.bf16 %v862, %v861
  %v917 = vpack.c.bf16 %v864, %v863
  %v918 = vpack.c.bf16 %v866, %v865
  %v919 = vpack.c.bf16 %v868, %v867
  %v920 = vpack.c.bf16 %v870, %v869
  %v921 = vpack.c.bf16 %v872, %v871
  %v922 = vpack.c.bf16 %v874, %v873
  %v923 = vpack.c.bf16 %v876, %v875
  %v924 = vpack.c.bf16 %v878, %v877
  %v925 = vpack.c.bf16 %v880, %v879
  %v926 = vpack.c.bf16 %v882, %v881
  %v927 = vpack.c.bf16 %v884, %v883
  %v928 = vpack.c.bf16 %v886, %v885
  %v929 = vpack.c.bf16 %v888, %v887
  %v930 = vpack.c.bf16 %v890, %v889
  %v931 = vpack.c.bf16 %v892, %v891
  %v932 = vpack.c.bf16 %v894, %v893
  %v933 = vpack.c.bf16 %v896, %v895
  %v934 = vpack.c.bf16 %v898, %v897
  %v935 = vpack.c.bf16 %v900, %v899
  %v936 = vpack.c.bf16 %v902, %v901
  %v937 = vpack.c.bf16 %v904, %v903
  %v938 = vpack.c.bf16 %v906, %v905
  %v971 = vunpack.c.l.b16 %v907
  %v972 = vunpack.c.h.b16 %v907
  %v973 = vunpack.c.l.b16 %v908
  %v974 = vunpack.c.h.b16 %v908
  %v975 = vunpack.c.l.b16 %v909
  %v976 = vunpack.c.h.b16 %v909
  %v977 = vunpack.c.l.b16 %v910
  %v978 = vunpack.c.h.b16 %v910
  %v979 = vunpack.c.l.b16 %v911
  %v980 = vunpack.c.h.b16 %v911
  %v981 = vunpack.c.l.b16 %v912
  %v982 = vunpack.c.h.b16 %v912
  %v983 = vunpack.c.l.b16 %v913
  %v984 = vunpack.c.h.b16 %v913
  %v985 = vunpack.c.l.b16 %v914
  %v986 = vunpack.c.h.b16 %v914
  %v987 = vunpack.c.l.b16 %v915
  %v988 = vunpack.c.h.b16 %v915
  %v989 = vunpack.c.l.b16 %v916
  %v990 = vunpack.c.h.b16 %v916
  %v991 = vunpack.c.l.b16 %v917
  %v992 = vunpack.c.h.b16 %v917
  %v993 = vunpack.c.l.b16 %v918
  %v994 = vunpack.c.h.b16 %v918
  %v995 = vunpack.c.l.b16 %v919
  %v996 = vunpack.c.h.b16 %v919
  %v997 = vunpack.c.l.b16 %v920
  %v998 = vunpack.c.h.b16 %v920
  %v999 = vunpack.c.l.b16 %v921
  %v1000 = vunpack.c.h.b16 %v921
  %v1001 = vunpack.c.l.b16 %v922
  %v1002 = vunpack.c.h.b16 %v922
  %v1003 = vunpack.c.l.b16 %v923
  %v1004 = vunpack.c.h.b16 %v923
  %v1005 = vunpack.c.l.b16 %v924
  %v1006 = vunpack.c.h.b16 %v924
  %v1007 = vunpack.c.l.b16 %v925
  %v1008 = vunpack.c.h.b16 %v925
  %v1009 = vunpack.c.l.b16 %v926
  %v1010 = vunpack.c.h.b16 %v926
  %v1011 = vunpack.c.l.b16 %v927
  %v1012 = vunpack.c.h.b16 %v927
  %v1013 = vunpack.c.l.b16 %v928
  %v1014 = vunpack.c.h.b16 %v928
  %v1015 = vunpack.c.l.b16 %v929
  %v1016 = vunpack.c.h.b16 %v929
  %v1017 = vunpack.c.l.b16 %v930
  %v1018 = vunpack.c.h.b16 %v930
  %v1019 = vunpack.c.l.b16 %v931
  %v1020 = vunpack.c.h.b16 %v931
  %v1021 = vunpack.c.l.b16 %v932
  %v1022 = vunpack.c.h.b16 %v932
  %v1023 = vunpack.c.l.b16 %v933
  %v1024 = vunpack.c.h.b16 %v933
  %v1025 = vunpack.c.l.b16 %v934
  %v1026 = vunpack.c.h.b16 %v934
  %v1027 = vunpack.c.l.b16 %v935
  %v1028 = vunpack.c.h.b16 %v935
  %v1029 = vunpack.c.l.b16 %v936
  %v1030 = vunpack.c.h.b16 %v936
  %v1031 = vunpack.c.l.b16 %v937
  %v1032 = vunpack.c.h.b16 %v937
  %v1033 = vunpack.c.l.b16 %v938
  %v1034 = vunpack.c.h.b16 %v938
  %v1035 = vpack.c.b16 %v971, %v971
  %v1036 = vpack.c.b16 %v972, %v972
  %v1037 = vpack.c.b16 %v973, %v973
  %v1038 = vpack.c.b16 %v974, %v974
  %v1039 = vpack.c.b16 %v975, %v975
  %v1040 = vpack.c.b16 %v976, %v976
  %v1041 = vpack.c.b16 %v977, %v977
  %v1042 = vpack.c.b16 %v978, %v978
  %v1043 = vpack.c.b16 %v979, %v979
  %v1044 = vpack.c.b16 %v980, %v980
  %v1045 = vpack.c.b16 %v981, %v981
  %v1046 = vpack.c.b16 %v982, %v982
  %v1047 = vpack.c.b16 %v983, %v983
  %v1048 = vpack.c.b16 %v984, %v984
  %v1049 = vpack.c.b16 %v985, %v985
  %v1050 = vpack.c.b16 %v986, %v986
  %v1051 = vpack.c.b16 %v987, %v987
  %v1052 = vpack.c.b16 %v988, %v988
  %v1053 = vpack.c.b16 %v989, %v989
  %v1054 = vpack.c.b16 %v990, %v990
  %v1055 = vpack.c.b16 %v991, %v991
  %v1056 = vpack.c.b16 %v992, %v992
  %v1057 = vpack.c.b16 %v993, %v993
  %v1058 = vpack.c.b16 %v994, %v994
  %v1059 = vpack.c.b16 %v995, %v995
  %v1060 = vpack.c.b16 %v996, %v996
  %v1061 = vpack.c.b16 %v997, %v997
  %v1062 = vpack.c.b16 %v998, %v998
  %v1063 = vpack.c.b16 %v999, %v999
  %v1064 = vpack.c.b16 %v1000, %v1000
  %v1065 = vpack.c.b16 %v1001, %v1001
  %v1066 = vpack.c.b16 %v1002, %v1002
  %v1067 = vpack.c.b16 %v1003, %v1003
  %v1068 = vpack.c.b16 %v1004, %v1004
  %v1069 = vpack.c.b16 %v1005, %v1005
  %v1070 = vpack.c.b16 %v1006, %v1006
  %v1071 = vpack.c.b16 %v1007, %v1007
  %v1072 = vpack.c.b16 %v1008, %v1008
  %v1073 = vpack.c.b16 %v1009, %v1009
  %v1074 = vpack.c.b16 %v1010, %v1010
  %v1075 = vpack.c.b16 %v1011, %v1011
  %v1076 = vpack.c.b16 %v1012, %v1012
  %v1077 = vpack.c.b16 %v1013, %v1013
  %v1078 = vpack.c.b16 %v1014, %v1014
  %v1079 = vpack.c.b16 %v1015, %v1015
  %v1080 = vpack.c.b16 %v1016, %v1016
  %v1081 = vpack.c.b16 %v1017, %v1017
  %v1082 = vpack.c.b16 %v1018, %v1018
  %v1083 = vpack.c.b16 %v1019, %v1019
  %v1084 = vpack.c.b16 %v1020, %v1020
  %v1085 = vpack.c.b16 %v1021, %v1021
  %v1086 = vpack.c.b16 %v1022, %v1022
  %v1087 = vpack.c.b16 %v1023, %v1023
  %v1088 = vpack.c.b16 %v1024, %v1024
  %v1089 = vpack.c.b16 %v1025, %v1025
  %v1090 = vpack.c.b16 %v1026, %v1026
  %v1091 = vpack.c.b16 %v1027, %v1027
  %v1092 = vpack.c.b16 %v1028, %v1028
  %v1093 = vpack.c.b16 %v1029, %v1029
  %v1094 = vpack.c.b16 %v1030, %v1030
  %v1095 = vpack.c.b16 %v1031, %v1031
  %v1096 = vpack.c.b16 %v1032, %v1032
  %v1097 = vpack.c.b16 %v1033, %v1033
  %v1098 = vpack.c.b16 %v1034, %v1034
  %1163 = vst [vmem:[%s3] sm:$0xf] %v1035
  %1164 = vst [vmem:[%s3 + $0x4] sm:$0xf] %v1036
  %1165 = vst [vmem:[%s3 + $0x8] sm:$0xf] %v1037
  %1166 = vst [vmem:[%s3 + $0xc] sm:$0xf] %v1038
  %1167 = vst [vmem:[%s3 + $0x10] sm:$0xf] %v1039
  %1168 = vst [vmem:[%s3 + $0x14] sm:$0xf] %v1040
  %1169 = vst [vmem:[%s3 + $0x18] sm:$0xf] %v1041
  %1170 = vst [vmem:[%s3 + $0x1c] sm:$0xf] %v1042
  %1171 = vst [vmem:[%s3 + $0x20] sm:$0xf] %v1043
  %1172 = vst [vmem:[%s3 + $0x24] sm:$0xf] %v1044
  %1173 = vst [vmem:[%s3 + $0x28] sm:$0xf] %v1045
  %1174 = vst [vmem:[%s3 + $0x2c] sm:$0xf] %v1046
  %1175 = vst [vmem:[%s3 + $0x30] sm:$0xf] %v1047
  %1176 = vst [vmem:[%s3 + $0x34] sm:$0xf] %v1048
  %1177 = vst [vmem:[%s3 + $0x38] sm:$0xf] %v1049
  %1178 = vst [vmem:[%s3 + $0x3c] sm:$0xf] %v1050
  %1179 = vst [vmem:[%s3 + $0x40] sm:$0xf] %v1051
  %1180 = vst [vmem:[%s3 + $0x44] sm:$0xf] %v1052
  %1181 = vst [vmem:[%s3 + $0x48] sm:$0xf] %v1053
  %1182 = vst [vmem:[%s3 + $0x4c] sm:$0xf] %v1054
  %1183 = vst [vmem:[%s3 + $0x50] sm:$0xf] %v1055
  %1184 = vst [vmem:[%s3 + $0x54] sm:$0xf] %v1056
  %1185 = vst [vmem:[%s3 + $0x58] sm:$0xf] %v1057
  %1186 = vst [vmem:[%s3 + $0x5c] sm:$0xf] %v1058
  %1187 = vst [vmem:[%s3 + $0x60] sm:$0xf] %v1059
  %1188 = vst [vmem:[%s3 + $0x64] sm:$0xf] %v1060
  %1189 = vst [vmem:[%s3 + $0x68] sm:$0xf] %v1061
  %1190 = vst [vmem:[%s3 + $0x6c] sm:$0xf] %v1062
  %1191 = vst [vmem:[%s3 + $0x70] sm:$0xf] %v1063
  %1192 = vst [vmem:[%s3 + $0x74] sm:$0xf] %v1064
  %1193 = vst [vmem:[%s3 + $0x78] sm:$0xf] %v1065
  %1194 = vst [vmem:[%s3 + $0x7c] sm:$0xf] %v1066
  %1195 = vst [vmem:[%s3 + $0x80] sm:$0xf] %v1067
  %1196 = vst [vmem:[%s3 + $0x84] sm:$0xf] %v1068
  %1197 = vst [vmem:[%s3 + $0x88] sm:$0xf] %v1069
  %1198 = vst [vmem:[%s3 + $0x8c] sm:$0xf] %v1070
  %1199 = vst [vmem:[%s3 + $0x90] sm:$0xf] %v1071
  %1200 = vst [vmem:[%s3 + $0x94] sm:$0xf] %v1072
  %1201 = vst [vmem:[%s3 + $0x98] sm:$0xf] %v1073
  %1202 = vst [vmem:[%s3 + $0x9c] sm:$0xf] %v1074
  %1203 = vst [vmem:[%s3 + $0xa0] sm:$0xf] %v1075
  %1204 = vst [vmem:[%s3 + $0xa4] sm:$0xf] %v1076
  %1205 = vst [vmem:[%s3 + $0xa8] sm:$0xf] %v1077
  %1206 = vst [vmem:[%s3 + $0xac] sm:$0xf] %v1078
  %1207 = vst [vmem:[%s3 + $0xb0] sm:$0xf] %v1079
  %1208 = vst [vmem:[%s3 + $0xb4] sm:$0xf] %v1080
  %1209 = vst [vmem:[%s3 + $0xb8] sm:$0xf] %v1081
  %1210 = vst [vmem:[%s3 + $0xbc] sm:$0xf] %v1082
  %1211 = vst [vmem:[%s3 + $0xc0] sm:$0xf] %v1083
  %1212 = vst [vmem:[%s3 + $0xc4] sm:$0xf] %v1084
  %1213 = vst [vmem:[%s3 + $0xc8] sm:$0xf] %v1085
  %1214 = vst [vmem:[%s3 + $0xcc] sm:$0xf] %v1086
  %1215 = vst [vmem:[%s3 + $0xd0] sm:$0xf] %v1087
  %1216 = vst [vmem:[%s3 + $0xd4] sm:$0xf] %v1088
  %1217 = vst [vmem:[%s3 + $0xd8] sm:$0xf] %v1089
  %1218 = vst [vmem:[%s3 + $0xdc] sm:$0xf] %v1090
  %1219 = vst [vmem:[%s3 + $0xe0] sm:$0xf] %v1091
  %1220 = vst [vmem:[%s3 + $0xe4] sm:$0xf] %v1092
  %1221 = vst [vmem:[%s3 + $0xe8] sm:$0xf] %v1093
  %1222 = vst [vmem:[%s3 + $0xec] sm:$0xf] %v1094
  %1223 = vst [vmem:[%s3 + $0xf0] sm:$0xf] %v1095
  %1224 = vst [vmem:[%s3 + $0xf4] sm:$0xf] %v1096
  %1225 = vst [vmem:[%s3 + $0xf8] sm:$0xf] %v1097
  %1226 = vst [vmem:[%s3 + $0xfc] sm:$0xf] %v1098
  // Predicated region
  $region14: #{encoder_forward.2} parent=0 // pred_check
    _
  $region15: #{encoder_forward.2} parent=0 // pred_check_branch
    %1228 = sbr.rel (0) target = $region17
  $region16: #{encoder_forward.2} parent=0 // pred_region
    _
  $region17: #{encoder_forward.2} parent=0 // pred_fallthru
    _
  // Predicated region
  $region18: #{encoder_forward.2} parent=0 // pred_check
    _
  $region19: #{encoder_forward.2} parent=0 // pred_check_branch
    %1230 = sbr.rel (0) target = $region21
  $region20: #{encoder_forward.2} parent=0 // pred_region
    _
  $region21: #{encoder_forward.2} parent=0 // pred_fallthru
    _

</llo_original>
